<compile_context>
chip_gen: v7x
topology: tpu7x:2x2x1
jax: 0.10.0
libtpu: 0.0.40
codegen_flags: <defaults>
</compile_context>

<pallas_src>
import functools

import numpy as np
import jax
import jax.numpy as jnp
from jax.experimental import pallas as pl
from jax.experimental.pallas import tpu as pltpu  # noqa: F401  (no TPU-specific params needed)

EPS = 1e-5  # nn.GroupNorm default eps


# ----------------------------------------------------------------------------
# Pallas kernels (channels on sublanes, batch*spatial on lanes, grid-less)
# ----------------------------------------------------------------------------
def _gn_relu_kernel(p_ref, w_ref, g_ref, b_ref, o_ref, *, batch):
    """y = W @ patches (batch merged into lanes), per-(channel, sample) GroupNorm
    over the spatial lane slice, affine, ReLU.  bf16 operands, f32 math."""
    y = jnp.dot(w_ref[...], p_ref[...], preferred_element_type=jnp.float32)  # (Cout, B*P)
    p = y.shape[1] // batch
    g = g_ref[...]                                           # (Cout, 1) f32
    beta = b_ref[...]
    outs = []
    for bi in range(batch):                                  # static unroll, B tiny
        yb = y[:, bi * p:(bi + 1) * p]                       # (Cout, P) static lane slice
        mean = jnp.mean(yb, axis=1, keepdims=True)
        d = yb - mean
        var = jnp.mean(d * d, axis=1, keepdims=True)         # biased (torch default)
        scale = g * jax.lax.rsqrt(var + EPS)                 # gamma * rsqrt folded
        outs.append(jnp.maximum(d * scale + beta, 0.0))
    o_ref[...] = jnp.concatenate(outs, axis=1).astype(o_ref.dtype)   # one dense store


def _phase_gn_relu_kernel(p_ref, w_ref, g_ref, b_ref, o_ref, *, batch, nphase=4):
    """Sub-pixel decomposed ConvTranspose2d(k4, s2, p1) + GroupNorm + ReLU.

    w_ref is (4*Cout, Cin*9): the 4 stride-2 output phases are stacked on the
    output rows so the whole transposed conv is ONE dense matmul over un-dilated
    3x3 patches (no structural zeros).  GroupNorm (per channel, per sample)
    reduces over phases and spatial lanes."""
    y = jnp.dot(w_ref[...], p_ref[...], preferred_element_type=jnp.float32)  # (4*Cout, B*P)
    cout = y.shape[0] // nphase
    p = y.shape[1] // batch
    g = g_ref[...]                                           # (Cout, 1) f32
    beta = b_ref[...]
    inv_n = 1.0 / (nphase * p)                               # full 2H*2W spatial count
    blocks = [[None] * batch for _ in range(nphase)]
    for bi in range(batch):                                  # static unroll
        phs = [y[ph * cout:(ph + 1) * cout, bi * p:(bi + 1) * p] for ph in range(nphase)]
        s = phs[0]
        for t in phs[1:]:
            s = s + t
        mean = jnp.sum(s, axis=1, keepdims=True) * inv_n     # (Cout, 1)
        ds, acc = [], None
        for t in phs:
            d = t - mean
            ds.append(d)
            acc = d * d if acc is None else acc + d * d
        var = jnp.sum(acc, axis=1, keepdims=True) * inv_n
        scale = g * jax.lax.rsqrt(var + EPS)
        for ph in range(nphase):
            blocks[ph][bi] = jnp.maximum(ds[ph] * scale + beta, 0.0)
    rows = [jnp.concatenate(blocks[ph], axis=1) for ph in range(nphase)]
    o_ref[...] = jnp.concatenate(rows, axis=0).astype(o_ref.dtype)   # one dense store


def _bias_tanh_kernel(p_ref, w_ref, b_ref, o_ref):
    """Final phase-decomposed transposed conv: matmul + bias + tanh (no norm)."""
    y = jnp.dot(w_ref[...], p_ref[...], preferred_element_type=jnp.float32) + b_ref[...]
    o_ref[...] = jnp.tanh(y).astype(o_ref.dtype)


def conv_gn_relu(patches, wmat, gamma, beta, batch):
    cout, n = wmat.shape[0], patches.shape[1]
    return pl.pallas_call(
        functools.partial(_gn_relu_kernel, batch=batch),
        out_shape=jax.ShapeDtypeStruct((cout, n), jnp.bfloat16),
    )(patches, wmat, gamma, beta)


def phase_conv_gn_relu(patches, wmat, gamma, beta, batch):
    rows, n = wmat.shape[0], patches.shape[1]
    return pl.pallas_call(
        functools.partial(_phase_gn_relu_kernel, batch=batch),
        out_shape=jax.ShapeDtypeStruct((rows, n), jnp.bfloat16),
    )(patches, wmat, gamma, beta)


def phase_bias_tanh(patches, wmat, bias):
    rows, n = wmat.shape[0], patches.shape[1]
    return pl.pallas_call(
        _bias_tanh_kernel,
        out_shape=jax.ShapeDtypeStruct((rows, n), jnp.float32),
    )(patches, wmat, bias)


# ----------------------------------------------------------------------------
# Thin XLA glue: (C, B, H, W)-layout im2col and the phase pixel-shuffle
# ----------------------------------------------------------------------------
def _im2col_cbhw(x, kh, kw, stride, pad):
    """x: (C, B, H, W) -> patches (C*kh*kw, B*Ho*Wo), row order (c, i, j)."""
    C, B, H, W = x.shape
    xp = jnp.pad(x, ((0, 0), (0, 0), (pad, pad), (pad, pad)))
    Ho = (H + 2 * pad - kh) // stride + 1
    Wo = (W + 2 * pad - kw) // stride + 1
    cols = []
    for i in range(kh):
        for j in range(kw):
            cols.append(xp[:, :, i:i + (Ho - 1) * stride + 1:stride,
                              j:j + (Wo - 1) * stride + 1:stride])
    pat = jnp.stack(cols, axis=1)                      # (C, kh*kw, B, Ho, Wo)
    return pat.reshape(C * kh * kw, B * Ho * Wo), Ho, Wo


def _pixel_shuffle(y, cout, batch, h, w):
    """y: (4*cout, batch*h*w) phase-major -> interleaved (cout, batch, 2h, 2w)."""
    y6 = y.reshape(2, 2, cout, batch, h, w)            # (a, b, co, bt, m, n)
    return jnp.transpose(y6, (2, 3, 4, 0, 5, 1)).reshape(cout, batch, 2 * h, 2 * w)


# ----------------------------------------------------------------------------
# Parameters (deterministic synthetic init, torch-layout weight shapes)
# ----------------------------------------------------------------------------
def init_params(key, z_dim, nfilter):
    nf = nfilter
    keys = jax.random.split(key, 24)
    n = lambda k, s, scale=0.1: scale * jax.random.normal(k, s, jnp.float32)
    return {
        # Encoder
        "e_conv1_w": n(keys[0], (nf // 4, 3, 3, 3)),        "e_conv1_b": n(keys[1], (nf // 4,)),
        "e_conv2_w": n(keys[2], (nf // 2, nf // 4, 3, 3)),  "e_conv2_b": n(keys[3], (nf // 2,)),
        "e_conv3_w": n(keys[4], (nf, nf // 2, 3, 3)),       "e_conv3_b": n(keys[5], (nf,)),
        "e_conv4_w": n(keys[6], (z_dim, nf, 3, 3)),         "e_conv4_b": n(keys[7], (z_dim,)),
        "fc1_w": n(keys[8], (z_dim, 10)),                   "fc1_b": n(keys[9], (z_dim,)),
        "e_gn1_g": jnp.ones((nf // 4,)), "e_gn1_b": jnp.zeros((nf // 4,)),
        "e_gn2_g": jnp.ones((nf // 2,)), "e_gn2_b": jnp.zeros((nf // 2,)),
        "e_gn3_g": jnp.ones((nf,)),      "e_gn3_b": jnp.zeros((nf,)),
        # Decoder (z_dim doubled inside Decoder.__init__)
        "d_conv1_w": n(keys[10], (2 * z_dim, nf, 4, 4)),    "d_conv1_b": n(keys[11], (nf,)),
        "d_conv2_w": n(keys[12], (nf, nf // 2, 4, 4)),      "d_conv2_b": n(keys[13], (nf // 2,)),
        "d_conv3_w": n(keys[14], (nf // 2, nf // 4, 4, 4)), "d_conv3_b": n(keys[15], (nf // 4,)),
        "d_conv4_w": n(keys[16], (nf // 4, 3, 4, 4)),       "d_conv4_b": n(keys[17], (3,)),
        "d_gn1_g": jnp.ones((nf,)),      "d_gn1_b": jnp.zeros((nf,)),
        "d_gn2_g": jnp.ones((nf // 2,)), "d_gn2_b": jnp.zeros((nf // 2,)),
        "d_gn3_g": jnp.ones((nf // 4,)), "d_gn3_b": jnp.zeros((nf // 4,)),
    }


def _phase_tconv_weight(w):
    """torch ConvTranspose2d weight (Cin, Cout, 4, 4), stride 2, padding 1
    -> phase-stacked direct-conv weight (4*Cout, Cin*9) over 3x3/s1/p1 patches.

    Output row 2m+a uses in[m-a'] taps w[ky = 3 - a - 2r], r in {0,1}; same for
    columns.  Tap (r, c) of phase (a, b) lands at 3x3 window position (a+r, b+c).
    """
    w = np.asarray(w, np.float32)
    cin, cout = w.shape[0], w.shape[1]
    blocks = []
    for a in (0, 1):
        for b in (0, 1):
            blk = np.zeros((cout, cin, 3, 3), np.float32)
            for r in (0, 1):
                for c in (0, 1):
                    blk[:, :, a + r, b + c] = w[:, :, 3 - a - 2 * r, 3 - b - 2 * c].T
            blocks.append(blk.reshape(cout, cin * 9))
    return jnp.asarray(np.concatenate(blocks, axis=0))       # (4*Cout, Cin*9)


def prepare_params(p):
    """Precompute matmul-form bf16 weights / f32 norm params once, off the hot path.

    Conv biases of GroupNorm-followed layers are dropped: per-channel mean
    subtraction makes them a no-op (num_groups == num_channels here)."""
    bf = lambda a: jnp.asarray(a, jnp.bfloat16)
    f32 = lambda a: jnp.asarray(a, jnp.float32)

    def conv_mat(w):   # torch Conv2d weight (Cout, Cin, KH, KW)
        return bf(w.reshape(w.shape[0], -1))

    def tconv_mat(w):  # torch ConvTranspose2d weight (Cin, Cout, KH, KW) -> flipped conv
        return bf(jnp.transpose(w[:, :, ::-1, ::-1], (1, 0, 2, 3)).reshape(w.shape[1], -1))

    def col(v):
        return f32(v.reshape(-1, 1))

    return {
        "e1_w": conv_mat(p["e_conv1_w"]), "e1_g": col(p["e_gn1_g"]), "e1_b": col(p["e_gn1_b"]),
        "e2_w": conv_mat(p["e_conv2_w"]), "e2_g": col(p["e_gn2_g"]), "e2_b": col(p["e_gn2_b"]),
        "e3_w": conv_mat(p["e_conv3_w"]), "e3_g": col(p["e_gn3_g"]), "e3_b": col(p["e_gn3_b"]),
        # e_conv4 + fc1: tiny (8x46 @ 46x2) -> plain XLA in the wrapper, f32.
        "e4_w": f32(p["e_conv4_w"]), "e4_b": f32(p["e_conv4_b"]),
        "fc1_w": f32(p["fc1_w"]), "fc1_b": f32(p["fc1_b"]),
        # d_conv1: k4 s2 p0 on a 1x1 map == stride-1 conv with flipped kernel, pad 3.
        "d1_w": tconv_mat(p["d_conv1_w"]), "d1_g": col(p["d_gn1_g"]), "d1_b": col(p["d_gn1_b"]),
        # d_conv2/3/4: phase (sub-pixel) decomposition, 4 phases stacked on rows.
        "d2_w": bf(_phase_tconv_weight(p["d_conv2_w"])),
        "d2_g": col(p["d_gn2_g"]), "d2_b": col(p["d_gn2_b"]),
        "d3_w": bf(_phase_tconv_weight(p["d_conv3_w"])),
        "d3_g": col(p["d_gn3_g"]), "d3_b": col(p["d_gn3_b"]),
        "d4_w": bf(_phase_tconv_weight(p["d_conv4_w"])),
        "d4_b": f32(jnp.tile(p["d_conv4_b"].reshape(1, -1), (4, 1)).reshape(-1, 1)),
    }


# ----------------------------------------------------------------------------
# AE forward.  x: (B, 3, 32, 32) float32 (torch NCHW), labels: (B,) int32.
# Activations flow in (C, B, H, W) bf16 so im2col feeds the kernels transpose-free.
# ----------------------------------------------------------------------------
def ae_forward(prep, x, labels):
    B = x.shape[0]
    xc = jnp.transpose(x, (1, 0, 2, 3)).astype(jnp.bfloat16)        # (3, B, 32, 32)

    # ---- Encoder ----
    pat, Ho, Wo = _im2col_cbhw(xc, 3, 3, 2, 1)                      # (27, B*256)
    h = conv_gn_relu(pat, prep["e1_w"], prep["e1_g"], prep["e1_b"], B).reshape(-1, B, Ho, Wo)

    pat, Ho, Wo = _im2col_cbhw(h, 3, 3, 2, 1)                       # (18, B*64)
    h = conv_gn_relu(pat, prep["e2_w"], prep["e2_g"], prep["e2_b"], B).reshape(-1, B, Ho, Wo)

    pat, Ho, Wo = _im2col_cbhw(h, 3, 3, 2, 1)                       # (36, B*16)
    h = conv_gn_relu(pat, prep["e3_w"], prep["e3_g"], prep["e3_b"], B).reshape(-1, B, Ho, Wo)

    # e_conv4 (k3 s2 p0 on 4x4 -> 1x1, top-left 3x3 window) + fc1: plain XLA.
    win = h[:, :, :3, :3].astype(jnp.float32)                       # (nf, B, 3, 3)
    z_conv = jnp.einsum("zcij,cbij->bz", prep["e4_w"], win) + prep["e4_b"]
    onehot = jax.nn.one_hot(labels, 10, dtype=jnp.float32)          # (B, 10)
    z_fc = onehot @ prep["fc1_w"].T + prep["fc1_b"]
    z = jnp.concatenate([z_conv, z_fc], axis=1)                     # (B, 2*z_dim) f32

    # ---- Decoder ----
    zmap = jnp.transpose(z, (1, 0)).astype(jnp.bfloat16).reshape(-1, B, 1, 1)

    # d_conv1: ConvTranspose k4 s2 p0 on a 1x1 map (flipped kernel, eff. pad 3).
    pat, Ho, Wo = _im2col_cbhw(zmap, 4, 4, 1, 3)                    # (2zd*16, B*16)
    d = conv_gn_relu(pat, prep["d1_w"], prep["d1_g"], prep["d1_b"], B).reshape(-1, B, Ho, Wo)

    # d_conv2 / d_conv3: phase-decomposed ConvTranspose k4 s2 p1.
    cd2 = prep["d2_g"].shape[0]
    pat, Ho, Wo = _im2col_cbhw(d, 3, 3, 1, 1)                       # (72, B*16)
    y = phase_conv_gn_relu(pat, prep["d2_w"], prep["d2_g"], prep["d2_b"], B)
    d = _pixel_shuffle(y, cd2, B, Ho, Wo)                           # (nf/2, B, 8, 8)

    cd3 = prep["d3_g"].shape[0]
    pat, Ho, Wo = _im2col_cbhw(d, 3, 3, 1, 1)                       # (36, B*64)
    y = phase_conv_gn_relu(pat, prep["d3_w"], prep["d3_g"], prep["d3_b"], B)
    d = _pixel_shuffle(y, cd3, B, Ho, Wo)                           # (nf/4, B, 16, 16)

    # d_conv4: phase-decomposed matmul + bias + tanh, then one small pixel-shuffle
    # transpose straight into torch (B, 3, 32, 32) layout.
    pat, Ho, Wo = _im2col_cbhw(d, 3, 3, 1, 1)                       # (18, B*256)
    y = phase_bias_tanh(pat, prep["d4_w"], prep["d4_b"])            # (12, B*256) f32
    y6 = y.reshape(2, 2, 3, B, Ho, Wo)                              # (a, b, co, bt, m, n)
    recon = jnp.transpose(y6, (3, 2, 4, 0, 5, 1)).reshape(B, 3, 2 * Ho, 2 * Wo)
    return recon, z


if __name__ == "__main__":
    Z_DIM, NFILTER = 4, 8
    key = jax.random.PRNGKey(0)
    k_params, k_x, k_y = jax.random.split(key, 3)

    params = init_params(k_params, Z_DIM, NFILTER)
    prep = prepare_params(params)                                   # one-time weight prep
    x = jax.random.normal(k_x, (2, 3, 32, 32), jnp.float32)         # NCHW like PyTorch
    y = jax.random.randint(k_y, (2,), 0, 10, jnp.int32)

    fwd = jax.jit(functools.partial(ae_forward, prep))
    recon, z = fwd(x, y)
    jax.block_until_ready((recon, z))

    assert recon.shape == (2, 3, 32, 32), recon.shape
    assert z.shape == (2, 2 * Z_DIM), z.shape
    assert bool(jnp.all(jnp.isfinite(recon))) and bool(jnp.all(jnp.isfinite(z)))
    print("KERNEL_OK")
</pallas_src>

<mosaic_0001>
module attributes {stable_mosaic.version = 11 : i64} {
  func.func @_gn_relu_kernel(%arg0: memref<27x512xbf16, #tpu.memory_space<vmem>>, %arg1: memref<2x27xbf16, #tpu.memory_space<vmem>>, %arg2: memref<2x1xf32, #tpu.memory_space<vmem>>, %arg3: memref<2x1xf32, #tpu.memory_space<vmem>>, %arg4: memref<2x512xbf16, #tpu.memory_space<vmem>>) attributes {dimension_semantics = [], scalar_prefetch = 0 : i64, scratch_operands = 0 : i64, tpu.core_type = #tpu.core_type<tc>} {
    %c0 = arith.constant 0 : index
    %c0_0 = arith.constant 0 : index
    %0 = vector.load %arg1[%c0, %c0_0] : memref<2x27xbf16, #tpu.memory_space<vmem>>, vector<2x27xbf16>
    %c0_1 = arith.constant 0 : index
    %c0_2 = arith.constant 0 : index
    %1 = vector.load %arg0[%c0_1, %c0_2] : memref<27x512xbf16, #tpu.memory_space<vmem>>, vector<27x512xbf16>
    %cst = arith.constant dense<0.000000e+00> : vector<2x512xf32>
    %2 = tpu.matmul %0, %1, %cst {dimension_numbers = #tpu.dot_dimension_numbers<[1], [0], [0], [1], [0, 0, 1, 1], [], []>} : vector<2x27xbf16>, vector<27x512xbf16>, vector<2x512xf32> -> vector<2x512xf32>
    %c0_3 = arith.constant 0 : index
    %c0_4 = arith.constant 0 : index
    %3 = vector.load %arg2[%c0_3, %c0_4] : memref<2x1xf32, #tpu.memory_space<vmem>>, vector<2x1xf32>
    %c0_5 = arith.constant 0 : index
    %c0_6 = arith.constant 0 : index
    %4 = vector.load %arg3[%c0_5, %c0_6] : memref<2x1xf32, #tpu.memory_space<vmem>>, vector<2x1xf32>
    %5 = vector.extract_strided_slice %2 {offsets = [0, 0], sizes = [2, 256], strides = [1, 1]} : vector<2x512xf32> to vector<2x256xf32>
    %cst_7 = arith.constant dense<0.000000e+00> : vector<2xf32>
    %6 = vector.multi_reduction <add>, %5, %cst_7 [1] : vector<2x256xf32> to vector<2xf32>
    %7 = vector.shape_cast %6 : vector<2xf32> to vector<2x1xf32>
    %cst_8 = arith.constant 2.560000e+02 : f32
    %8 = vector.broadcast %cst_8 : f32 to vector<2x1xf32>
    %9 = arith.divf %7, %8 : vector<2x1xf32>
    %10 = vector.broadcast %9 : vector<2x1xf32> to vector<2x256xf32>
    %11 = arith.subf %5, %10 : vector<2x256xf32>
    %12 = arith.mulf %11, %11 : vector<2x256xf32>
    %cst_9 = arith.constant dense<0.000000e+00> : vector<2xf32>
    %13 = vector.multi_reduction <add>, %12, %cst_9 [1] : vector<2x256xf32> to vector<2xf32>
    %14 = vector.shape_cast %13 : vector<2xf32> to vector<2x1xf32>
    %cst_10 = arith.constant 2.560000e+02 : f32
    %15 = vector.broadcast %cst_10 : f32 to vector<2x1xf32>
    %16 = arith.divf %14, %15 : vector<2x1xf32>
    %cst_11 = arith.constant 9.99999974E-6 : f32
    %17 = vector.broadcast %cst_11 : f32 to vector<2x1xf32>
    %18 = arith.addf %16, %17 : vector<2x1xf32>
    %19 = math.rsqrt %18 : vector<2x1xf32>
    %20 = arith.mulf %3, %19 : vector<2x1xf32>
    %21 = vector.broadcast %20 : vector<2x1xf32> to vector<2x256xf32>
    %22 = arith.mulf %11, %21 : vector<2x256xf32>
    %23 = vector.broadcast %4 : vector<2x1xf32> to vector<2x256xf32>
    %24 = arith.addf %22, %23 : vector<2x256xf32>
    %cst_12 = arith.constant 0.000000e+00 : f32
    %25 = vector.broadcast %cst_12 : f32 to vector<2x256xf32>
    %26 = arith.maximumf %24, %25 : vector<2x256xf32>
    %27 = vector.extract_strided_slice %2 {offsets = [0, 256], sizes = [2, 256], strides = [1, 1]} : vector<2x512xf32> to vector<2x256xf32>
    %cst_13 = arith.constant dense<0.000000e+00> : vector<2xf32>
    %28 = vector.multi_reduction <add>, %27, %cst_13 [1] : vector<2x256xf32> to vector<2xf32>
    %29 = vector.shape_cast %28 : vector<2xf32> to vector<2x1xf32>
    %cst_14 = arith.constant 2.560000e+02 : f32
    %30 = vector.broadcast %cst_14 : f32 to vector<2x1xf32>
    %31 = arith.divf %29, %30 : vector<2x1xf32>
    %32 = vector.broadcast %31 : vector<2x1xf32> to vector<2x256xf32>
    %33 = arith.subf %27, %32 : vector<2x256xf32>
    %34 = arith.mulf %33, %33 : vector<2x256xf32>
    %cst_15 = arith.constant dense<0.000000e+00> : vector<2xf32>
    %35 = vector.multi_reduction <add>, %34, %cst_15 [1] : vector<2x256xf32> to vector<2xf32>
    %36 = vector.shape_cast %35 : vector<2xf32> to vector<2x1xf32>
    %cst_16 = arith.constant 2.560000e+02 : f32
    %37 = vector.broadcast %cst_16 : f32 to vector<2x1xf32>
    %38 = arith.divf %36, %37 : vector<2x1xf32>
    %cst_17 = arith.constant 9.99999974E-6 : f32
    %39 = vector.broadcast %cst_17 : f32 to vector<2x1xf32>
    %40 = arith.addf %38, %39 : vector<2x1xf32>
    %41 = math.rsqrt %40 : vector<2x1xf32>
    %42 = arith.mulf %3, %41 : vector<2x1xf32>
    %43 = vector.broadcast %42 : vector<2x1xf32> to vector<2x256xf32>
    %44 = arith.mulf %33, %43 : vector<2x256xf32>
    %45 = vector.broadcast %4 : vector<2x1xf32> to vector<2x256xf32>
    %46 = arith.addf %44, %45 : vector<2x256xf32>
    %cst_18 = arith.constant 0.000000e+00 : f32
    %47 = vector.broadcast %cst_18 : f32 to vector<2x256xf32>
    %48 = arith.maximumf %46, %47 : vector<2x256xf32>
    %49 = tpu.concatenate %26, %48 in 1 : vector<2x256xf32>, vector<2x256xf32> -> vector<2x512xf32>
    %50 = arith.truncf %49 : vector<2x512xf32> to vector<2x512xbf16>
    %c0_19 = arith.constant 0 : index
    %c0_20 = arith.constant 0 : index
    %51 = vector.load %arg4[%c0_19, %c0_20] : memref<2x512xbf16, #tpu.memory_space<vmem>>, vector<2x512xbf16>
    tpu.vector_store %arg4[%c0_19, %c0_20], %50 {strides = array<i32>} : memref<2x512xbf16, #tpu.memory_space<vmem>>, vector<2x512xbf16>,
    return
  }
}

module attributes {stable_mosaic.version = 11 : i64} {
  func.func @_gn_relu_kernel(%arg0: memref<18x128xbf16, #tpu.memory_space<vmem>>, %arg1: memref<4x18xbf16, #tpu.memory_space<vmem>>, %arg2: memref<4x1xf32, #tpu.memory_space<vmem>>, %arg3: memref<4x1xf32, #tpu.memory_space<vmem>>, %arg4: memref<4x128xbf16, #tpu.memory_space<vmem>>) attributes {dimension_semantics = [], scalar_prefetch = 0 : i64, scratch_operands = 0 : i64, tpu.core_type = #tpu.core_type<tc>} {
    %c0 = arith.constant 0 : index
    %c0_0 = arith.constant 0 : index
    %0 = vector.load %arg1[%c0, %c0_0] : memref<4x18xbf16, #tpu.memory_space<vmem>>, vector<4x18xbf16>
    %c0_1 = arith.constant 0 : index
    %c0_2 = arith.constant 0 : index
    %1 = vector.load %arg0[%c0_1, %c0_2] : memref<18x128xbf16, #tpu.memory_space<vmem>>, vector<18x128xbf16>
    %cst = arith.constant dense<0.000000e+00> : vector<4x128xf32>
    %2 = tpu.matmul %0, %1, %cst {dimension_numbers = #tpu.dot_dimension_numbers<[1], [0], [0], [1], [0, 0, 1, 1], [], []>} : vector<4x18xbf16>, vector<18x128xbf16>, vector<4x128xf32> -> vector<4x128xf32>
    %c0_3 = arith.constant 0 : index
    %c0_4 = arith.constant 0 : index
    %3 = vector.load %arg2[%c0_3, %c0_4] : memref<4x1xf32, #tpu.memory_space<vmem>>, vector<4x1xf32>
    %c0_5 = arith.constant 0 : index
    %c0_6 = arith.constant 0 : index
    %4 = vector.load %arg3[%c0_5, %c0_6] : memref<4x1xf32, #tpu.memory_space<vmem>>, vector<4x1xf32>
    %5 = vector.extract_strided_slice %2 {offsets = [0, 0], sizes = [4, 64], strides = [1, 1]} : vector<4x128xf32> to vector<4x64xf32>
    %cst_7 = arith.constant dense<0.000000e+00> : vector<4xf32>
    %6 = vector.multi_reduction <add>, %5, %cst_7 [1] : vector<4x64xf32> to vector<4xf32>
    %7 = vector.shape_cast %6 : vector<4xf32> to vector<4x1xf32>
    %cst_8 = arith.constant 6.400000e+01 : f32
    %8 = vector.broadcast %cst_8 : f32 to vector<4x1xf32>
    %9 = arith.divf %7, %8 : vector<4x1xf32>
    %10 = vector.broadcast %9 : vector<4x1xf32> to vector<4x64xf32>
    %11 = arith.subf %5, %10 : vector<4x64xf32>
    %12 = arith.mulf %11, %11 : vector<4x64xf32>
    %cst_9 = arith.constant dense<0.000000e+00> : vector<4xf32>
    %13 = vector.multi_reduction <add>, %12, %cst_9 [1] : vector<4x64xf32> to vector<4xf32>
    %14 = vector.shape_cast %13 : vector<4xf32> to vector<4x1xf32>
    %cst_10 = arith.constant 6.400000e+01 : f32
    %15 = vector.broadcast %cst_10 : f32 to vector<4x1xf32>
    %16 = arith.divf %14, %15 : vector<4x1xf32>
    %cst_11 = arith.constant 9.99999974E-6 : f32
    %17 = vector.broadcast %cst_11 : f32 to vector<4x1xf32>
    %18 = arith.addf %16, %17 : vector<4x1xf32>
    %19 = math.rsqrt %18 : vector<4x1xf32>
    %20 = arith.mulf %3, %19 : vector<4x1xf32>
    %21 = vector.broadcast %20 : vector<4x1xf32> to vector<4x64xf32>
    %22 = arith.mulf %11, %21 : vector<4x64xf32>
    %23 = vector.broadcast %4 : vector<4x1xf32> to vector<4x64xf32>
    %24 = arith.addf %22, %23 : vector<4x64xf32>
    %cst_12 = arith.constant 0.000000e+00 : f32
    %25 = vector.broadcast %cst_12 : f32 to vector<4x64xf32>
    %26 = arith.maximumf %24, %25 : vector<4x64xf32>
    %27 = vector.extract_strided_slice %2 {offsets = [0, 64], sizes = [4, 64], strides = [1, 1]} : vector<4x128xf32> to vector<4x64xf32>
    %cst_13 = arith.constant dense<0.000000e+00> : vector<4xf32>
    %28 = vector.multi_reduction <add>, %27, %cst_13 [1] : vector<4x64xf32> to vector<4xf32>
    %29 = vector.shape_cast %28 : vector<4xf32> to vector<4x1xf32>
    %cst_14 = arith.constant 6.400000e+01 : f32
    %30 = vector.broadcast %cst_14 : f32 to vector<4x1xf32>
    %31 = arith.divf %29, %30 : vector<4x1xf32>
    %32 = vector.broadcast %31 : vector<4x1xf32> to vector<4x64xf32>
    %33 = arith.subf %27, %32 : vector<4x64xf32>
    %34 = arith.mulf %33, %33 : vector<4x64xf32>
    %cst_15 = arith.constant dense<0.000000e+00> : vector<4xf32>
    %35 = vector.multi_reduction <add>, %34, %cst_15 [1] : vector<4x64xf32> to vector<4xf32>
    %36 = vector.shape_cast %35 : vector<4xf32> to vector<4x1xf32>
    %cst_16 = arith.constant 6.400000e+01 : f32
    %37 = vector.broadcast %cst_16 : f32 to vector<4x1xf32>
    %38 = arith.divf %36, %37 : vector<4x1xf32>
    %cst_17 = arith.constant 9.99999974E-6 : f32
    %39 = vector.broadcast %cst_17 : f32 to vector<4x1xf32>
    %40 = arith.addf %38, %39 : vector<4x1xf32>
    %41 = math.rsqrt %40 : vector<4x1xf32>
    %42 = arith.mulf %3, %41 : vector<4x1xf32>
    %43 = vector.broadcast %42 : vector<4x1xf32> to vector<4x64xf32>
    %44 = arith.mulf %33, %43 : vector<4x64xf32>
    %45 = vector.broadcast %4 : vector<4x1xf32> to vector<4x64xf32>
    %46 = arith.addf %44, %45 : vector<4x64xf32>
    %cst_18 = arith.constant 0.000000e+00 : f32
    %47 = vector.broadcast %cst_18 : f32 to vector<4x64xf32>
    %48 = arith.maximumf %46, %47 : vector<4x64xf32>
    %49 = tpu.concatenate %26, %48 in 1 : vector<4x64xf32>, vector<4x64xf32> -> vector<4x128xf32>
    %50 = arith.truncf %49 : vector<4x128xf32> to vector<4x128xbf16>
    %c0_19 = arith.constant 0 : index
    %c0_20 = arith.constant 0 : index
    %51 = vector.load %arg4[%c0_19, %c0_20] : memref<4x128xbf16, #tpu.memory_space<vmem>>, vector<4x128xbf16>
    tpu.vector_store %arg4[%c0_19, %c0_20], %50 {strides = array<i32>} : memref<4x128xbf16, #tpu.memory_space<vmem>>, vector<4x128xbf16>,
    return
  }
}

module attributes {stable_mosaic.version = 11 : i64} {
  func.func @_gn_relu_kernel(%arg0: memref<36x32xbf16, #tpu.memory_space<vmem>>, %arg1: memref<8x36xbf16, #tpu.memory_space<vmem>>, %arg2: memref<8x1xf32, #tpu.memory_space<vmem>>, %arg3: memref<8x1xf32, #tpu.memory_space<vmem>>, %arg4: memref<8x32xbf16, #tpu.memory_space<vmem>>) attributes {dimension_semantics = [], scalar_prefetch = 0 : i64, scratch_operands = 0 : i64, tpu.core_type = #tpu.core_type<tc>} {
    %c0 = arith.constant 0 : index
    %c0_0 = arith.constant 0 : index
    %0 = vector.load %arg1[%c0, %c0_0] : memref<8x36xbf16, #tpu.memory_space<vmem>>, vector<8x36xbf16>
    %c0_1 = arith.constant 0 : index
    %c0_2 = arith.constant 0 : index
    %1 = vector.load %arg0[%c0_1, %c0_2] : memref<36x32xbf16, #tpu.memory_space<vmem>>, vector<36x32xbf16>
    %cst = arith.constant dense<0.000000e+00> : vector<8x32xf32>
    %2 = tpu.matmul %0, %1, %cst {dimension_numbers = #tpu.dot_dimension_numbers<[1], [0], [0], [1], [0, 0, 1, 1], [], []>} : vector<8x36xbf16>, vector<36x32xbf16>, vector<8x32xf32> -> vector<8x32xf32>
    %c0_3 = arith.constant 0 : index
    %c0_4 = arith.constant 0 : index
    %3 = vector.load %arg2[%c0_3, %c0_4] : memref<8x1xf32, #tpu.memory_space<vmem>>, vector<8x1xf32>
    %c0_5 = arith.constant 0 : index
    %c0_6 = arith.constant 0 : index
    %4 = vector.load %arg3[%c0_5, %c0_6] : memref<8x1xf32, #tpu.memory_space<vmem>>, vector<8x1xf32>
    %5 = vector.extract_strided_slice %2 {offsets = [0, 0], sizes = [8, 16], strides = [1, 1]} : vector<8x32xf32> to vector<8x16xf32>
    %cst_7 = arith.constant dense<0.000000e+00> : vector<8xf32>
    %6 = vector.multi_reduction <add>, %5, %cst_7 [1] : vector<8x16xf32> to vector<8xf32>
    %7 = vector.shape_cast %6 : vector<8xf32> to vector<8x1xf32>
    %cst_8 = arith.constant 1.600000e+01 : f32
    %8 = vector.broadcast %cst_8 : f32 to vector<8x1xf32>
    %9 = arith.divf %7, %8 : vector<8x1xf32>
    %10 = vector.broadcast %9 : vector<8x1xf32> to vector<8x16xf32>
    %11 = arith.subf %5, %10 : vector<8x16xf32>
    %12 = arith.mulf %11, %11 : vector<8x16xf32>
    %cst_9 = arith.constant dense<0.000000e+00> : vector<8xf32>
    %13 = vector.multi_reduction <add>, %12, %cst_9 [1] : vector<8x16xf32> to vector<8xf32>
    %14 = vector.shape_cast %13 : vector<8xf32> to vector<8x1xf32>
    %cst_10 = arith.constant 1.600000e+01 : f32
    %15 = vector.broadcast %cst_10 : f32 to vector<8x1xf32>
    %16 = arith.divf %14, %15 : vector<8x1xf32>
    %cst_11 = arith.constant 9.99999974E-6 : f32
    %17 = vector.broadcast %cst_11 : f32 to vector<8x1xf32>
    %18 = arith.addf %16, %17 : vector<8x1xf32>
    %19 = math.rsqrt %18 : vector<8x1xf32>
    %20 = arith.mulf %3, %19 : vector<8x1xf32>
    %21 = vector.broadcast %20 : vector<8x1xf32> to vector<8x16xf32>
    %22 = arith.mulf %11, %21 : vector<8x16xf32>
    %23 = vector.broadcast %4 : vector<8x1xf32> to vector<8x16xf32>
    %24 = arith.addf %22, %23 : vector<8x16xf32>
    %cst_12 = arith.constant 0.000000e+00 : f32
    %25 = vector.broadcast %cst_12 : f32 to vector<8x16xf32>
    %26 = arith.maximumf %24, %25 : vector<8x16xf32>
    %27 = vector.extract_strided_slice %2 {offsets = [0, 16], sizes = [8, 16], strides = [1, 1]} : vector<8x32xf32> to vector<8x16xf32>
    %cst_13 = arith.constant dense<0.000000e+00> : vector<8xf32>
    %28 = vector.multi_reduction <add>, %27, %cst_13 [1] : vector<8x16xf32> to vector<8xf32>
    %29 = vector.shape_cast %28 : vector<8xf32> to vector<8x1xf32>
    %cst_14 = arith.constant 1.600000e+01 : f32
    %30 = vector.broadcast %cst_14 : f32 to vector<8x1xf32>
    %31 = arith.divf %29, %30 : vector<8x1xf32>
    %32 = vector.broadcast %31 : vector<8x1xf32> to vector<8x16xf32>
    %33 = arith.subf %27, %32 : vector<8x16xf32>
    %34 = arith.mulf %33, %33 : vector<8x16xf32>
    %cst_15 = arith.constant dense<0.000000e+00> : vector<8xf32>
    %35 = vector.multi_reduction <add>, %34, %cst_15 [1] : vector<8x16xf32> to vector<8xf32>
    %36 = vector.shape_cast %35 : vector<8xf32> to vector<8x1xf32>
    %cst_16 = arith.constant 1.600000e+01 : f32
    %37 = vector.broadcast %cst_16 : f32 to vector<8x1xf32>
    %38 = arith.divf %36, %37 : vector<8x1xf32>
    %cst_17 = arith.constant 9.99999974E-6 : f32
    %39 = vector.broadcast %cst_17 : f32 to vector<8x1xf32>
    %40 = arith.addf %38, %39 : vector<8x1xf32>
    %41 = math.rsqrt %40 : vector<8x1xf32>
    %42 = arith.mulf %3, %41 : vector<8x1xf32>
    %43 = vector.broadcast %42 : vector<8x1xf32> to vector<8x16xf32>
    %44 = arith.mulf %33, %43 : vector<8x16xf32>
    %45 = vector.broadcast %4 : vector<8x1xf32> to vector<8x16xf32>
    %46 = arith.addf %44, %45 : vector<8x16xf32>
    %cst_18 = arith.constant 0.000000e+00 : f32
    %47 = vector.broadcast %cst_18 : f32 to vector<8x16xf32>
    %48 = arith.maximumf %46, %47 : vector<8x16xf32>
    %49 = tpu.concatenate %26, %48 in 1 : vector<8x16xf32>, vector<8x16xf32> -> vector<8x32xf32>
    %50 = arith.truncf %49 : vector<8x32xf32> to vector<8x32xbf16>
    %c0_19 = arith.constant 0 : index
    %c0_20 = arith.constant 0 : index
    %51 = vector.load %arg4[%c0_19, %c0_20] : memref<8x32xbf16, #tpu.memory_space<vmem>>, vector<8x32xbf16>
    tpu.vector_store %arg4[%c0_19, %c0_20], %50 {strides = array<i32>} : memref<8x32xbf16, #tpu.memory_space<vmem>>, vector<8x32xbf16>,
    return
  }
}

module attributes {stable_mosaic.version = 11 : i64} {
  func.func @_gn_relu_kernel(%arg0: memref<128x32xbf16, #tpu.memory_space<vmem>>, %arg1: memref<8x128xbf16, #tpu.memory_space<vmem>>, %arg2: memref<8x1xf32, #tpu.memory_space<vmem>>, %arg3: memref<8x1xf32, #tpu.memory_space<vmem>>, %arg4: memref<8x32xbf16, #tpu.memory_space<vmem>>) attributes {dimension_semantics = [], scalar_prefetch = 0 : i64, scratch_operands = 0 : i64, tpu.core_type = #tpu.core_type<tc>} {
    %c0 = arith.constant 0 : index
    %c0_0 = arith.constant 0 : index
    %0 = vector.load %arg1[%c0, %c0_0] : memref<8x128xbf16, #tpu.memory_space<vmem>>, vector<8x128xbf16>
    %c0_1 = arith.constant 0 : index
    %c0_2 = arith.constant 0 : index
    %1 = vector.load %arg0[%c0_1, %c0_2] : memref<128x32xbf16, #tpu.memory_space<vmem>>, vector<128x32xbf16>
    %cst = arith.constant dense<0.000000e+00> : vector<8x32xf32>
    %2 = tpu.matmul %0, %1, %cst {dimension_numbers = #tpu.dot_dimension_numbers<[1], [0], [0], [1], [0, 0, 1, 1], [], []>} : vector<8x128xbf16>, vector<128x32xbf16>, vector<8x32xf32> -> vector<8x32xf32>
    %c0_3 = arith.constant 0 : index
    %c0_4 = arith.constant 0 : index
    %3 = vector.load %arg2[%c0_3, %c0_4] : memref<8x1xf32, #tpu.memory_space<vmem>>, vector<8x1xf32>
    %c0_5 = arith.constant 0 : index
    %c0_6 = arith.constant 0 : index
    %4 = vector.load %arg3[%c0_5, %c0_6] : memref<8x1xf32, #tpu.memory_space<vmem>>, vector<8x1xf32>
    %5 = vector.extract_strided_slice %2 {offsets = [0, 0], sizes = [8, 16], strides = [1, 1]} : vector<8x32xf32> to vector<8x16xf32>
    %cst_7 = arith.constant dense<0.000000e+00> : vector<8xf32>
    %6 = vector.multi_reduction <add>, %5, %cst_7 [1] : vector<8x16xf32> to vector<8xf32>
    %7 = vector.shape_cast %6 : vector<8xf32> to vector<8x1xf32>
    %cst_8 = arith.constant 1.600000e+01 : f32
    %8 = vector.broadcast %cst_8 : f32 to vector<8x1xf32>
    %9 = arith.divf %7, %8 : vector<8x1xf32>
    %10 = vector.broadcast %9 : vector<8x1xf32> to vector<8x16xf32>
    %11 = arith.subf %5, %10 : vector<8x16xf32>
    %12 = arith.mulf %11, %11 : vector<8x16xf32>
    %cst_9 = arith.constant dense<0.000000e+00> : vector<8xf32>
    %13 = vector.multi_reduction <add>, %12, %cst_9 [1] : vector<8x16xf32> to vector<8xf32>
    %14 = vector.shape_cast %13 : vector<8xf32> to vector<8x1xf32>
    %cst_10 = arith.constant 1.600000e+01 : f32
    %15 = vector.broadcast %cst_10 : f32 to vector<8x1xf32>
    %16 = arith.divf %14, %15 : vector<8x1xf32>
    %cst_11 = arith.constant 9.99999974E-6 : f32
    %17 = vector.broadcast %cst_11 : f32 to vector<8x1xf32>
    %18 = arith.addf %16, %17 : vector<8x1xf32>
    %19 = math.rsqrt %18 : vector<8x1xf32>
    %20 = arith.mulf %3, %19 : vector<8x1xf32>
    %21 = vector.broadcast %20 : vector<8x1xf32> to vector<8x16xf32>
    %22 = arith.mulf %11, %21 : vector<8x16xf32>
    %23 = vector.broadcast %4 : vector<8x1xf32> to vector<8x16xf32>
    %24 = arith.addf %22, %23 : vector<8x16xf32>
    %cst_12 = arith.constant 0.000000e+00 : f32
    %25 = vector.broadcast %cst_12 : f32 to vector<8x16xf32>
    %26 = arith.maximumf %24, %25 : vector<8x16xf32>
    %27 = vector.extract_strided_slice %2 {offsets = [0, 16], sizes = [8, 16], strides = [1, 1]} : vector<8x32xf32> to vector<8x16xf32>
    %cst_13 = arith.constant dense<0.000000e+00> : vector<8xf32>
    %28 = vector.multi_reduction <add>, %27, %cst_13 [1] : vector<8x16xf32> to vector<8xf32>
    %29 = vector.shape_cast %28 : vector<8xf32> to vector<8x1xf32>
    %cst_14 = arith.constant 1.600000e+01 : f32
    %30 = vector.broadcast %cst_14 : f32 to vector<8x1xf32>
    %31 = arith.divf %29, %30 : vector<8x1xf32>
    %32 = vector.broadcast %31 : vector<8x1xf32> to vector<8x16xf32>
    %33 = arith.subf %27, %32 : vector<8x16xf32>
    %34 = arith.mulf %33, %33 : vector<8x16xf32>
    %cst_15 = arith.constant dense<0.000000e+00> : vector<8xf32>
    %35 = vector.multi_reduction <add>, %34, %cst_15 [1] : vector<8x16xf32> to vector<8xf32>
    %36 = vector.shape_cast %35 : vector<8xf32> to vector<8x1xf32>
    %cst_16 = arith.constant 1.600000e+01 : f32
    %37 = vector.broadcast %cst_16 : f32 to vector<8x1xf32>
    %38 = arith.divf %36, %37 : vector<8x1xf32>
    %cst_17 = arith.constant 9.99999974E-6 : f32
    %39 = vector.broadcast %cst_17 : f32 to vector<8x1xf32>
    %40 = arith.addf %38, %39 : vector<8x1xf32>
    %41 = math.rsqrt %40 : vector<8x1xf32>
    %42 = arith.mulf %3, %41 : vector<8x1xf32>
    %43 = vector.broadcast %42 : vector<8x1xf32> to vector<8x16xf32>
    %44 = arith.mulf %33, %43 : vector<8x16xf32>
    %45 = vector.broadcast %4 : vector<8x1xf32> to vector<8x16xf32>
    %46 = arith.addf %44, %45 : vector<8x16xf32>
    %cst_18 = arith.constant 0.000000e+00 : f32
    %47 = vector.broadcast %cst_18 : f32 to vector<8x16xf32>
    %48 = arith.maximumf %46, %47 : vector<8x16xf32>
    %49 = tpu.concatenate %26, %48 in 1 : vector<8x16xf32>, vector<8x16xf32> -> vector<8x32xf32>
    %50 = arith.truncf %49 : vector<8x32xf32> to vector<8x32xbf16>
    %c0_19 = arith.constant 0 : index
    %c0_20 = arith.constant 0 : index
    %51 = vector.load %arg4[%c0_19, %c0_20] : memref<8x32xbf16, #tpu.memory_space<vmem>>, vector<8x32xbf16>
    tpu.vector_store %arg4[%c0_19, %c0_20], %50 {strides = array<i32>} : memref<8x32xbf16, #tpu.memory_space<vmem>>, vector<8x32xbf16>,
    return
  }
}

module attributes {stable_mosaic.version = 11 : i64} {
  func.func @_phase_gn_relu_kernel(%arg0: memref<72x32xbf16, #tpu.memory_space<vmem>>, %arg1: memref<16x72xbf16, #tpu.memory_space<vmem>>, %arg2: memref<4x1xf32, #tpu.memory_space<vmem>>, %arg3: memref<4x1xf32, #tpu.memory_space<vmem>>, %arg4: memref<16x32xbf16, #tpu.memory_space<vmem>>) attributes {dimension_semantics = [], scalar_prefetch = 0 : i64, scratch_operands = 0 : i64, tpu.core_type = #tpu.core_type<tc>} {
    %c0 = arith.constant 0 : index
    %c0_0 = arith.constant 0 : index
    %0 = vector.load %arg1[%c0, %c0_0] : memref<16x72xbf16, #tpu.memory_space<vmem>>, vector<16x72xbf16>
    %c0_1 = arith.constant 0 : index
    %c0_2 = arith.constant 0 : index
    %1 = vector.load %arg0[%c0_1, %c0_2] : memref<72x32xbf16, #tpu.memory_space<vmem>>, vector<72x32xbf16>
    %cst = arith.constant dense<0.000000e+00> : vector<16x32xf32>
    %2 = tpu.matmul %0, %1, %cst {dimension_numbers = #tpu.dot_dimension_numbers<[1], [0], [0], [1], [0, 0, 1, 1], [], []>} : vector<16x72xbf16>, vector<72x32xbf16>, vector<16x32xf32> -> vector<16x32xf32>
    %c0_3 = arith.constant 0 : index
    %c0_4 = arith.constant 0 : index
    %3 = vector.load %arg2[%c0_3, %c0_4] : memref<4x1xf32, #tpu.memory_space<vmem>>, vector<4x1xf32>
    %c0_5 = arith.constant 0 : index
    %c0_6 = arith.constant 0 : index
    %4 = vector.load %arg3[%c0_5, %c0_6] : memref<4x1xf32, #tpu.memory_space<vmem>>, vector<4x1xf32>
    %5 = vector.extract_strided_slice %2 {offsets = [0, 0], sizes = [4, 16], strides = [1, 1]} : vector<16x32xf32> to vector<4x16xf32>
    %6 = vector.extract_strided_slice %2 {offsets = [4, 0], sizes = [4, 16], strides = [1, 1]} : vector<16x32xf32> to vector<4x16xf32>
    %7 = vector.extract_strided_slice %2 {offsets = [8, 0], sizes = [4, 16], strides = [1, 1]} : vector<16x32xf32> to vector<4x16xf32>
    %8 = vector.extract_strided_slice %2 {offsets = [12, 0], sizes = [4, 16], strides = [1, 1]} : vector<16x32xf32> to vector<4x16xf32>
    %9 = arith.addf %5, %6 : vector<4x16xf32>
    %10 = arith.addf %9, %7 : vector<4x16xf32>
    %11 = arith.addf %10, %8 : vector<4x16xf32>
    %cst_7 = arith.constant dense<0.000000e+00> : vector<4xf32>
    %12 = vector.multi_reduction <add>, %11, %cst_7 [1] : vector<4x16xf32> to vector<4xf32>
    %13 = vector.shape_cast %12 : vector<4xf32> to vector<4x1xf32>
    %cst_8 = arith.constant 1.562500e-02 : f32
    %14 = vector.broadcast %cst_8 : f32 to vector<4x1xf32>
    %15 = arith.mulf %13, %14 : vector<4x1xf32>
    %16 = vector.broadcast %15 : vector<4x1xf32> to vector<4x16xf32>
    %17 = arith.subf %5, %16 : vector<4x16xf32>
    %18 = arith.mulf %17, %17 : vector<4x16xf32>
    %19 = vector.broadcast %15 : vector<4x1xf32> to vector<4x16xf32>
    %20 = arith.subf %6, %19 : vector<4x16xf32>
    %21 = arith.mulf %20, %20 : vector<4x16xf32>
    %22 = arith.addf %18, %21 : vector<4x16xf32>
    %23 = vector.broadcast %15 : vector<4x1xf32> to vector<4x16xf32>
    %24 = arith.subf %7, %23 : vector<4x16xf32>
    %25 = arith.mulf %24, %24 : vector<4x16xf32>
    %26 = arith.addf %22, %25 : vector<4x16xf32>
    %27 = vector.broadcast %15 : vector<4x1xf32> to vector<4x16xf32>
    %28 = arith.subf %8, %27 : vector<4x16xf32>
    %29 = arith.mulf %28, %28 : vector<4x16xf32>
    %30 = arith.addf %26, %29 : vector<4x16xf32>
    %cst_9 = arith.constant dense<0.000000e+00> : vector<4xf32>
    %31 = vector.multi_reduction <add>, %30, %cst_9 [1] : vector<4x16xf32> to vector<4xf32>
    %32 = vector.shape_cast %31 : vector<4xf32> to vector<4x1xf32>
    %cst_10 = arith.constant 1.562500e-02 : f32
    %33 = vector.broadcast %cst_10 : f32 to vector<4x1xf32>
    %34 = arith.mulf %32, %33 : vector<4x1xf32>
    %cst_11 = arith.constant 9.99999974E-6 : f32
    %35 = vector.broadcast %cst_11 : f32 to vector<4x1xf32>
    %36 = arith.addf %34, %35 : vector<4x1xf32>
    %37 = math.rsqrt %36 : vector<4x1xf32>
    %38 = arith.mulf %3, %37 : vector<4x1xf32>
    %39 = vector.broadcast %38 : vector<4x1xf32> to vector<4x16xf32>
    %40 = arith.mulf %17, %39 : vector<4x16xf32>
    %41 = vector.broadcast %4 : vector<4x1xf32> to vector<4x16xf32>
    %42 = arith.addf %40, %41 : vector<4x16xf32>
    %cst_12 = arith.constant 0.000000e+00 : f32
    %43 = vector.broadcast %cst_12 : f32 to vector<4x16xf32>
    %44 = arith.maximumf %42, %43 : vector<4x16xf32>
    %45 = vector.broadcast %38 : vector<4x1xf32> to vector<4x16xf32>
    %46 = arith.mulf %20, %45 : vector<4x16xf32>
    %47 = vector.broadcast %4 : vector<4x1xf32> to vector<4x16xf32>
    %48 = arith.addf %46, %47 : vector<4x16xf32>
    %cst_13 = arith.constant 0.000000e+00 : f32
    %49 = vector.broadcast %cst_13 : f32 to vector<4x16xf32>
    %50 = arith.maximumf %48, %49 : vector<4x16xf32>
    %51 = vector.broadcast %38 : vector<4x1xf32> to vector<4x16xf32>
    %52 = arith.mulf %24, %51 : vector<4x16xf32>
    %53 = vector.broadcast %4 : vector<4x1xf32> to vector<4x16xf32>
    %54 = arith.addf %52, %53 : vector<4x16xf32>
    %cst_14 = arith.constant 0.000000e+00 : f32
    %55 = vector.broadcast %cst_14 : f32 to vector<4x16xf32>
    %56 = arith.maximumf %54, %55 : vector<4x16xf32>
    %57 = vector.broadcast %38 : vector<4x1xf32> to vector<4x16xf32>
    %58 = arith.mulf %28, %57 : vector<4x16xf32>
    %59 = vector.broadcast %4 : vector<4x1xf32> to vector<4x16xf32>
    %60 = arith.addf %58, %59 : vector<4x16xf32>
    %cst_15 = arith.constant 0.000000e+00 : f32
    %61 = vector.broadcast %cst_15 : f32 to vector<4x16xf32>
    %62 = arith.maximumf %60, %61 : vector<4x16xf32>
    %63 = vector.extract_strided_slice %2 {offsets = [0, 16], sizes = [4, 16], strides = [1, 1]} : vector<16x32xf32> to vector<4x16xf32>
    %64 = vector.extract_strided_slice %2 {offsets = [4, 16], sizes = [4, 16], strides = [1, 1]} : vector<16x32xf32> to vector<4x16xf32>
    %65 = vector.extract_strided_slice %2 {offsets = [8, 16], sizes = [4, 16], strides = [1, 1]} : vector<16x32xf32> to vector<4x16xf32>
    %66 = vector.extract_strided_slice %2 {offsets = [12, 16], sizes = [4, 16], strides = [1, 1]} : vector<16x32xf32> to vector<4x16xf32>
    %67 = arith.addf %63, %64 : vector<4x16xf32>
    %68 = arith.addf %67, %65 : vector<4x16xf32>
    %69 = arith.addf %68, %66 : vector<4x16xf32>
    %cst_16 = arith.constant dense<0.000000e+00> : vector<4xf32>
    %70 = vector.multi_reduction <add>, %69, %cst_16 [1] : vector<4x16xf32> to vector<4xf32>
    %71 = vector.shape_cast %70 : vector<4xf32> to vector<4x1xf32>
    %cst_17 = arith.constant 1.562500e-02 : f32
    %72 = vector.broadcast %cst_17 : f32 to vector<4x1xf32>
    %73 = arith.mulf %71, %72 : vector<4x1xf32>
    %74 = vector.broadcast %73 : vector<4x1xf32> to vector<4x16xf32>
    %75 = arith.subf %63, %74 : vector<4x16xf32>
    %76 = arith.mulf %75, %75 : vector<4x16xf32>
    %77 = vector.broadcast %73 : vector<4x1xf32> to vector<4x16xf32>
    %78 = arith.subf %64, %77 : vector<4x16xf32>
    %79 = arith.mulf %78, %78 : vector<4x16xf32>
    %80 = arith.addf %76, %79 : vector<4x16xf32>
    %81 = vector.broadcast %73 : vector<4x1xf32> to vector<4x16xf32>
    %82 = arith.subf %65, %81 : vector<4x16xf32>
    %83 = arith.mulf %82, %82 : vector<4x16xf32>
    %84 = arith.addf %80, %83 : vector<4x16xf32>
    %85 = vector.broadcast %73 : vector<4x1xf32> to vector<4x16xf32>
    %86 = arith.subf %66, %85 : vector<4x16xf32>
    %87 = arith.mulf %86, %86 : vector<4x16xf32>
    %88 = arith.addf %84, %87 : vector<4x16xf32>
    %cst_18 = arith.constant dense<0.000000e+00> : vector<4xf32>
    %89 = vector.multi_reduction <add>, %88, %cst_18 [1] : vector<4x16xf32> to vector<4xf32>
    %90 = vector.shape_cast %89 : vector<4xf32> to vector<4x1xf32>
    %cst_19 = arith.constant 1.562500e-02 : f32
    %91 = vector.broadcast %cst_19 : f32 to vector<4x1xf32>
    %92 = arith.mulf %90, %91 : vector<4x1xf32>
    %cst_20 = arith.constant 9.99999974E-6 : f32
    %93 = vector.broadcast %cst_20 : f32 to vector<4x1xf32>
    %94 = arith.addf %92, %93 : vector<4x1xf32>
    %95 = math.rsqrt %94 : vector<4x1xf32>
    %96 = arith.mulf %3, %95 : vector<4x1xf32>
    %97 = vector.broadcast %96 : vector<4x1xf32> to vector<4x16xf32>
    %98 = arith.mulf %75, %97 : vector<4x16xf32>
    %99 = vector.broadcast %4 : vector<4x1xf32> to vector<4x16xf32>
    %100 = arith.addf %98, %99 : vector<4x16xf32>
    %cst_21 = arith.constant 0.000000e+00 : f32
    %101 = vector.broadcast %cst_21 : f32 to vector<4x16xf32>
    %102 = arith.maximumf %100, %101 : vector<4x16xf32>
    %103 = vector.broadcast %96 : vector<4x1xf32> to vector<4x16xf32>
    %104 = arith.mulf %78, %103 : vector<4x16xf32>
    %105 = vector.broadcast %4 : vector<4x1xf32> to vector<4x16xf32>
    %106 = arith.addf %104, %105 : vector<4x16xf32>
    %cst_22 = arith.constant 0.000000e+00 : f32
    %107 = vector.broadcast %cst_22 : f32 to vector<4x16xf32>
    %108 = arith.maximumf %106, %107 : vector<4x16xf32>
    %109 = vector.broadcast %96 : vector<4x1xf32> to vector<4x16xf32>
    %110 = arith.mulf %82, %109 : vector<4x16xf32>
    %111 = vector.broadcast %4 : vector<4x1xf32> to vector<4x16xf32>
    %112 = arith.addf %110, %111 : vector<4x16xf32>
    %cst_23 = arith.constant 0.000000e+00 : f32
    %113 = vector.broadcast %cst_23 : f32 to vector<4x16xf32>
    %114 = arith.maximumf %112, %113 : vector<4x16xf32>
    %115 = vector.broadcast %96 : vector<4x1xf32> to vector<4x16xf32>
    %116 = arith.mulf %86, %115 : vector<4x16xf32>
    %117 = vector.broadcast %4 : vector<4x1xf32> to vector<4x16xf32>
    %118 = arith.addf %116, %117 : vector<4x16xf32>
    %cst_24 = arith.constant 0.000000e+00 : f32
    %119 = vector.broadcast %cst_24 : f32 to vector<4x16xf32>
    %120 = arith.maximumf %118, %119 : vector<4x16xf32>
    %121 = tpu.concatenate %44, %102 in 1 : vector<4x16xf32>, vector<4x16xf32> -> vector<4x32xf32>
    %122 = tpu.concatenate %50, %108 in 1 : vector<4x16xf32>, vector<4x16xf32> -> vector<4x32xf32>
    %123 = tpu.concatenate %56, %114 in 1 : vector<4x16xf32>, vector<4x16xf32> -> vector<4x32xf32>
    %124 = tpu.concatenate %62, %120 in 1 : vector<4x16xf32>, vector<4x16xf32> -> vector<4x32xf32>
    %125 = tpu.concatenate %121, %122, %123, %124 in 0 : vector<4x32xf32>, vector<4x32xf32>, vector<4x32xf32>, vector<4x32xf32> -> vector<16x32xf32>
    %126 = arith.truncf %125 : vector<16x32xf32> to vector<16x32xbf16>
    %c0_25 = arith.constant 0 : index
    %c0_26 = arith.constant 0 : index
    %127 = vector.load %arg4[%c0_25, %c0_26] : memref<16x32xbf16, #tpu.memory_space<vmem>>, vector<16x32xbf16>
    tpu.vector_store %arg4[%c0_25, %c0_26], %126 {strides = array<i32>} : memref<16x32xbf16, #tpu.memory_space<vmem>>, vector<16x32xbf16>,
    return
  }
}

module attributes {stable_mosaic.version = 11 : i64} {
  func.func @_phase_gn_relu_kernel(%arg0: memref<36x128xbf16, #tpu.memory_space<vmem>>, %arg1: memref<8x36xbf16, #tpu.memory_space<vmem>>, %arg2: memref<2x1xf32, #tpu.memory_space<vmem>>, %arg3: memref<2x1xf32, #tpu.memory_space<vmem>>, %arg4: memref<8x128xbf16, #tpu.memory_space<vmem>>) attributes {dimension_semantics = [], scalar_prefetch = 0 : i64, scratch_operands = 0 : i64, tpu.core_type = #tpu.core_type<tc>} {
    %c0 = arith.constant 0 : index
    %c0_0 = arith.constant 0 : index
    %0 = vector.load %arg1[%c0, %c0_0] : memref<8x36xbf16, #tpu.memory_space<vmem>>, vector<8x36xbf16>
    %c0_1 = arith.constant 0 : index
    %c0_2 = arith.constant 0 : index
    %1 = vector.load %arg0[%c0_1, %c0_2] : memref<36x128xbf16, #tpu.memory_space<vmem>>, vector<36x128xbf16>
    %cst = arith.constant dense<0.000000e+00> : vector<8x128xf32>
    %2 = tpu.matmul %0, %1, %cst {dimension_numbers = #tpu.dot_dimension_numbers<[1], [0], [0], [1], [0, 0, 1, 1], [], []>} : vector<8x36xbf16>, vector<36x128xbf16>, vector<8x128xf32> -> vector<8x128xf32>
    %c0_3 = arith.constant 0 : index
    %c0_4 = arith.constant 0 : index
    %3 = vector.load %arg2[%c0_3, %c0_4] : memref<2x1xf32, #tpu.memory_space<vmem>>, vector<2x1xf32>
    %c0_5 = arith.constant 0 : index
    %c0_6 = arith.constant 0 : index
    %4 = vector.load %arg3[%c0_5, %c0_6] : memref<2x1xf32, #tpu.memory_space<vmem>>, vector<2x1xf32>
    %5 = vector.extract_strided_slice %2 {offsets = [0, 0], sizes = [2, 64], strides = [1, 1]} : vector<8x128xf32> to vector<2x64xf32>
    %6 = vector.extract_strided_slice %2 {offsets = [2, 0], sizes = [2, 64], strides = [1, 1]} : vector<8x128xf32> to vector<2x64xf32>
    %7 = vector.extract_strided_slice %2 {offsets = [4, 0], sizes = [2, 64], strides = [1, 1]} : vector<8x128xf32> to vector<2x64xf32>
    %8 = vector.extract_strided_slice %2 {offsets = [6, 0], sizes = [2, 64], strides = [1, 1]} : vector<8x128xf32> to vector<2x64xf32>
    %9 = arith.addf %5, %6 : vector<2x64xf32>
    %10 = arith.addf %9, %7 : vector<2x64xf32>
    %11 = arith.addf %10, %8 : vector<2x64xf32>
    %cst_7 = arith.constant dense<0.000000e+00> : vector<2xf32>
    %12 = vector.multi_reduction <add>, %11, %cst_7 [1] : vector<2x64xf32> to vector<2xf32>
    %13 = vector.shape_cast %12 : vector<2xf32> to vector<2x1xf32>
    %cst_8 = arith.constant 3.906250e-03 : f32
    %14 = vector.broadcast %cst_8 : f32 to vector<2x1xf32>
    %15 = arith.mulf %13, %14 : vector<2x1xf32>
    %16 = vector.broadcast %15 : vector<2x1xf32> to vector<2x64xf32>
    %17 = arith.subf %5, %16 : vector<2x64xf32>
    %18 = arith.mulf %17, %17 : vector<2x64xf32>
    %19 = vector.broadcast %15 : vector<2x1xf32> to vector<2x64xf32>
    %20 = arith.subf %6, %19 : vector<2x64xf32>
    %21 = arith.mulf %20, %20 : vector<2x64xf32>
    %22 = arith.addf %18, %21 : vector<2x64xf32>
    %23 = vector.broadcast %15 : vector<2x1xf32> to vector<2x64xf32>
    %24 = arith.subf %7, %23 : vector<2x64xf32>
    %25 = arith.mulf %24, %24 : vector<2x64xf32>
    %26 = arith.addf %22, %25 : vector<2x64xf32>
    %27 = vector.broadcast %15 : vector<2x1xf32> to vector<2x64xf32>
    %28 = arith.subf %8, %27 : vector<2x64xf32>
    %29 = arith.mulf %28, %28 : vector<2x64xf32>
    %30 = arith.addf %26, %29 : vector<2x64xf32>
    %cst_9 = arith.constant dense<0.000000e+00> : vector<2xf32>
    %31 = vector.multi_reduction <add>, %30, %cst_9 [1] : vector<2x64xf32> to vector<2xf32>
    %32 = vector.shape_cast %31 : vector<2xf32> to vector<2x1xf32>
    %cst_10 = arith.constant 3.906250e-03 : f32
    %33 = vector.broadcast %cst_10 : f32 to vector<2x1xf32>
    %34 = arith.mulf %32, %33 : vector<2x1xf32>
    %cst_11 = arith.constant 9.99999974E-6 : f32
    %35 = vector.broadcast %cst_11 : f32 to vector<2x1xf32>
    %36 = arith.addf %34, %35 : vector<2x1xf32>
    %37 = math.rsqrt %36 : vector<2x1xf32>
    %38 = arith.mulf %3, %37 : vector<2x1xf32>
    %39 = vector.broadcast %38 : vector<2x1xf32> to vector<2x64xf32>
    %40 = arith.mulf %17, %39 : vector<2x64xf32>
    %41 = vector.broadcast %4 : vector<2x1xf32> to vector<2x64xf32>
    %42 = arith.addf %40, %41 : vector<2x64xf32>
    %cst_12 = arith.constant 0.000000e+00 : f32
    %43 = vector.broadcast %cst_12 : f32 to vector<2x64xf32>
    %44 = arith.maximumf %42, %43 : vector<2x64xf32>
    %45 = vector.broadcast %38 : vector<2x1xf32> to vector<2x64xf32>
    %46 = arith.mulf %20, %45 : vector<2x64xf32>
    %47 = vector.broadcast %4 : vector<2x1xf32> to vector<2x64xf32>
    %48 = arith.addf %46, %47 : vector<2x64xf32>
    %cst_13 = arith.constant 0.000000e+00 : f32
    %49 = vector.broadcast %cst_13 : f32 to vector<2x64xf32>
    %50 = arith.maximumf %48, %49 : vector<2x64xf32>
    %51 = vector.broadcast %38 : vector<2x1xf32> to vector<2x64xf32>
    %52 = arith.mulf %24, %51 : vector<2x64xf32>
    %53 = vector.broadcast %4 : vector<2x1xf32> to vector<2x64xf32>
    %54 = arith.addf %52, %53 : vector<2x64xf32>
    %cst_14 = arith.constant 0.000000e+00 : f32
    %55 = vector.broadcast %cst_14 : f32 to vector<2x64xf32>
    %56 = arith.maximumf %54, %55 : vector<2x64xf32>
    %57 = vector.broadcast %38 : vector<2x1xf32> to vector<2x64xf32>
    %58 = arith.mulf %28, %57 : vector<2x64xf32>
    %59 = vector.broadcast %4 : vector<2x1xf32> to vector<2x64xf32>
    %60 = arith.addf %58, %59 : vector<2x64xf32>
    %cst_15 = arith.constant 0.000000e+00 : f32
    %61 = vector.broadcast %cst_15 : f32 to vector<2x64xf32>
    %62 = arith.maximumf %60, %61 : vector<2x64xf32>
    %63 = vector.extract_strided_slice %2 {offsets = [0, 64], sizes = [2, 64], strides = [1, 1]} : vector<8x128xf32> to vector<2x64xf32>
    %64 = vector.extract_strided_slice %2 {offsets = [2, 64], sizes = [2, 64], strides = [1, 1]} : vector<8x128xf32> to vector<2x64xf32>
    %65 = vector.extract_strided_slice %2 {offsets = [4, 64], sizes = [2, 64], strides = [1, 1]} : vector<8x128xf32> to vector<2x64xf32>
    %66 = vector.extract_strided_slice %2 {offsets = [6, 64], sizes = [2, 64], strides = [1, 1]} : vector<8x128xf32> to vector<2x64xf32>
    %67 = arith.addf %63, %64 : vector<2x64xf32>
    %68 = arith.addf %67, %65 : vector<2x64xf32>
    %69 = arith.addf %68, %66 : vector<2x64xf32>
    %cst_16 = arith.constant dense<0.000000e+00> : vector<2xf32>
    %70 = vector.multi_reduction <add>, %69, %cst_16 [1] : vector<2x64xf32> to vector<2xf32>
    %71 = vector.shape_cast %70 : vector<2xf32> to vector<2x1xf32>
    %cst_17 = arith.constant 3.906250e-03 : f32
    %72 = vector.broadcast %cst_17 : f32 to vector<2x1xf32>
    %73 = arith.mulf %71, %72 : vector<2x1xf32>
    %74 = vector.broadcast %73 : vector<2x1xf32> to vector<2x64xf32>
    %75 = arith.subf %63, %74 : vector<2x64xf32>
    %76 = arith.mulf %75, %75 : vector<2x64xf32>
    %77 = vector.broadcast %73 : vector<2x1xf32> to vector<2x64xf32>
    %78 = arith.subf %64, %77 : vector<2x64xf32>
    %79 = arith.mulf %78, %78 : vector<2x64xf32>
    %80 = arith.addf %76, %79 : vector<2x64xf32>
    %81 = vector.broadcast %73 : vector<2x1xf32> to vector<2x64xf32>
    %82 = arith.subf %65, %81 : vector<2x64xf32>
    %83 = arith.mulf %82, %82 : vector<2x64xf32>
    %84 = arith.addf %80, %83 : vector<2x64xf32>
    %85 = vector.broadcast %73 : vector<2x1xf32> to vector<2x64xf32>
    %86 = arith.subf %66, %85 : vector<2x64xf32>
    %87 = arith.mulf %86, %86 : vector<2x64xf32>
    %88 = arith.addf %84, %87 : vector<2x64xf32>
    %cst_18 = arith.constant dense<0.000000e+00> : vector<2xf32>
    %89 = vector.multi_reduction <add>, %88, %cst_18 [1] : vector<2x64xf32> to vector<2xf32>
    %90 = vector.shape_cast %89 : vector<2xf32> to vector<2x1xf32>
    %cst_19 = arith.constant 3.906250e-03 : f32
    %91 = vector.broadcast %cst_19 : f32 to vector<2x1xf32>
    %92 = arith.mulf %90, %91 : vector<2x1xf32>
    %cst_20 = arith.constant 9.99999974E-6 : f32
    %93 = vector.broadcast %cst_20 : f32 to vector<2x1xf32>
    %94 = arith.addf %92, %93 : vector<2x1xf32>
    %95 = math.rsqrt %94 : vector<2x1xf32>
    %96 = arith.mulf %3, %95 : vector<2x1xf32>
    %97 = vector.broadcast %96 : vector<2x1xf32> to vector<2x64xf32>
    %98 = arith.mulf %75, %97 : vector<2x64xf32>
    %99 = vector.broadcast %4 : vector<2x1xf32> to vector<2x64xf32>
    %100 = arith.addf %98, %99 : vector<2x64xf32>
    %cst_21 = arith.constant 0.000000e+00 : f32
    %101 = vector.broadcast %cst_21 : f32 to vector<2x64xf32>
    %102 = arith.maximumf %100, %101 : vector<2x64xf32>
    %103 = vector.broadcast %96 : vector<2x1xf32> to vector<2x64xf32>
    %104 = arith.mulf %78, %103 : vector<2x64xf32>
    %105 = vector.broadcast %4 : vector<2x1xf32> to vector<2x64xf32>
    %106 = arith.addf %104, %105 : vector<2x64xf32>
    %cst_22 = arith.constant 0.000000e+00 : f32
    %107 = vector.broadcast %cst_22 : f32 to vector<2x64xf32>
    %108 = arith.maximumf %106, %107 : vector<2x64xf32>
    %109 = vector.broadcast %96 : vector<2x1xf32> to vector<2x64xf32>
    %110 = arith.mulf %82, %109 : vector<2x64xf32>
    %111 = vector.broadcast %4 : vector<2x1xf32> to vector<2x64xf32>
    %112 = arith.addf %110, %111 : vector<2x64xf32>
    %cst_23 = arith.constant 0.000000e+00 : f32
    %113 = vector.broadcast %cst_23 : f32 to vector<2x64xf32>
    %114 = arith.maximumf %112, %113 : vector<2x64xf32>
    %115 = vector.broadcast %96 : vector<2x1xf32> to vector<2x64xf32>
    %116 = arith.mulf %86, %115 : vector<2x64xf32>
    %117 = vector.broadcast %4 : vector<2x1xf32> to vector<2x64xf32>
    %118 = arith.addf %116, %117 : vector<2x64xf32>
    %cst_24 = arith.constant 0.000000e+00 : f32
    %119 = vector.broadcast %cst_24 : f32 to vector<2x64xf32>
    %120 = arith.maximumf %118, %119 : vector<2x64xf32>
    %121 = tpu.concatenate %44, %102 in 1 : vector<2x64xf32>, vector<2x64xf32> -> vector<2x128xf32>
    %122 = tpu.concatenate %50, %108 in 1 : vector<2x64xf32>, vector<2x64xf32> -> vector<2x128xf32>
    %123 = tpu.concatenate %56, %114 in 1 : vector<2x64xf32>, vector<2x64xf32> -> vector<2x128xf32>
    %124 = tpu.concatenate %62, %120 in 1 : vector<2x64xf32>, vector<2x64xf32> -> vector<2x128xf32>
    %125 = tpu.concatenate %121, %122, %123, %124 in 0 : vector<2x128xf32>, vector<2x128xf32>, vector<2x128xf32>, vector<2x128xf32> -> vector<8x128xf32>
    %126 = arith.truncf %125 : vector<8x128xf32> to vector<8x128xbf16>
    %c0_25 = arith.constant 0 : index
    %c0_26 = arith.constant 0 : index
    %127 = vector.load %arg4[%c0_25, %c0_26] : memref<8x128xbf16, #tpu.memory_space<vmem>>, vector<8x128xbf16>
    tpu.vector_store %arg4[%c0_25, %c0_26], %126 {strides = array<i32>} : memref<8x128xbf16, #tpu.memory_space<vmem>>, vector<8x128xbf16>,
    return
  }
}

module attributes {stable_mosaic.version = 11 : i64} {
  func.func @_bias_tanh_kernel(%arg0: memref<18x512xbf16, #tpu.memory_space<vmem>>, %arg1: memref<12x18xbf16, #tpu.memory_space<vmem>>, %arg2: memref<12x1xf32, #tpu.memory_space<vmem>>, %arg3: memref<12x512xf32, #tpu.memory_space<vmem>>) attributes {dimension_semantics = [], scalar_prefetch = 0 : i64, scratch_operands = 0 : i64, tpu.core_type = #tpu.core_type<tc>} {
    %c0 = arith.constant 0 : index
    %c0_0 = arith.constant 0 : index
    %0 = vector.load %arg1[%c0, %c0_0] : memref<12x18xbf16, #tpu.memory_space<vmem>>, vector<12x18xbf16>
    %c0_1 = arith.constant 0 : index
    %c0_2 = arith.constant 0 : index
    %1 = vector.load %arg0[%c0_1, %c0_2] : memref<18x512xbf16, #tpu.memory_space<vmem>>, vector<18x512xbf16>
    %cst = arith.constant dense<0.000000e+00> : vector<12x512xf32>
    %2 = tpu.matmul %0, %1, %cst {dimension_numbers = #tpu.dot_dimension_numbers<[1], [0], [0], [1], [0, 0, 1, 1], [], []>} : vector<12x18xbf16>, vector<18x512xbf16>, vector<12x512xf32> -> vector<12x512xf32>
    %c0_3 = arith.constant 0 : index
    %c0_4 = arith.constant 0 : index
    %3 = vector.load %arg2[%c0_3, %c0_4] : memref<12x1xf32, #tpu.memory_space<vmem>>, vector<12x1xf32>
    %4 = vector.broadcast %3 : vector<12x1xf32> to vector<12x512xf32>
    %5 = arith.addf %2, %4 : vector<12x512xf32>
    %6 = math.tanh %5 : vector<12x512xf32>
    %c0_5 = arith.constant 0 : index
    %c0_6 = arith.constant 0 : index
    %7 = vector.load %arg3[%c0_5, %c0_6] : memref<12x512xf32, #tpu.memory_space<vmem>>, vector<12x512xf32>
    tpu.vector_store %arg3[%c0_5, %c0_6], %6 {strides = array<i32>} : memref<12x512xf32, #tpu.memory_space<vmem>>, vector<12x512xf32>,
    return
  }
}

</mosaic_0001>

<llo_original>
// kernel: ae_forward.7
$region0: #{ae_forward.7}
  #allocation0 [shape = 'u32[]', space=smem, size = 0x4, offset = 0x4, fixed_abs, tag = 'smem constant byte address 0x4 - core index']
  #allocation1 [shape = 'u32[144,128]{1,0:T(1,128)}', space=vmem, size = 0x12000, scoped, tag = 'internal scratch']
  %s0 = inlined_call_operand.vmem [shape: bf16[27,512], index: 0, kind: input, shape index: {}]
  %s1 = inlined_call_operand.vmem [shape: bf16[2,27], index: 1, kind: input, shape index: {}]
  %s2 = inlined_call_operand.vmem [shape: f32[2,1], index: 2, kind: input, shape index: {}]
  %s3 = inlined_call_operand.vmem [shape: f32[2,1], index: 3, kind: input, shape index: {}]
  %s4 = inlined_call_operand.vmem [shape: bf16[2,512], index: 4, kind: output, shape index: {}]
  %s5 = sld [smem:[#allocation0]]
  $region26: #{ae_forward.7} parent=0
    _
  %s7 = ssub.s32 1, %s5
  %s8 = scalar_select 0, %s7, %s5
  // Predicated region
  $region2: #{ae_forward.7} parent=0 // pred_check
    _
  $region3: #{ae_forward.7} parent=0 // pred_check_branch
    %10 = sbr.rel (0) target = $region5
  $region4: #{ae_forward.7} parent=0 // pred_region
    _
  $region5: #{ae_forward.7} parent=0 // pred_fallthru
    _
  // Predicated region
  $region6: #{ae_forward.7} parent=0 // pred_check
    _
  $region7: #{ae_forward.7} parent=0 // pred_check_branch
    %12 = sbr.rel (0) target = $region9
  $region8: #{ae_forward.7} parent=0 // pred_region
    _
  $region9: #{ae_forward.7} parent=0 // pred_fallthru
    _
  // Predicated region
  $region10: #{ae_forward.7} parent=0 // pred_check
    _
  $region11: #{ae_forward.7} parent=0 // pred_check_branch
    %14 = sbr.rel (0) target = $region13
  $region12: #{ae_forward.7} parent=0 // pred_region
    _
  $region13: #{ae_forward.7} parent=0 // pred_fallthru
    _
  // Predicated region
  $region14: #{ae_forward.7} parent=0 // pred_check
    _
  $region15: #{ae_forward.7} parent=0 // pred_check_branch
    %16 = sbr.rel (0) target = $region17
  $region16: #{ae_forward.7} parent=0 // pred_region
    _
  $region17: #{ae_forward.7} parent=0 // pred_fallthru
    _
  %v18 = vld [vmem:[%s1] sm:$0x1]
  %v19 = vld [vmem:[%s0] sm:$0xff]
  %v20 = vld [vmem:[%s0 + $0x8] sm:$0xff]
  %v21 = vld [vmem:[%s0 + $0x10] sm:$0xff]
  %v22 = vld [vmem:[%s0 + $0x18] sm:$0xff]
  %v23 = vld [vmem:[%s0 + $0x20] sm:$0xff]
  %v24 = vld [vmem:[%s0 + $0x28] sm:$0xff]
  %v25 = vld [vmem:[%s0 + $0x30] sm:$0x33]
  %v26 = vld [vmem:[%s0 + $0x38] sm:$0x33]
  %v35 = vunpack.c.l.b16 %v19
  %v36 = vunpack.c.h.b16 %v19
  %v37 = vunpack.c.l.b16 %v20
  %v38 = vunpack.c.h.b16 %v20
  %v39 = vunpack.c.l.b16 %v21
  %v40 = vunpack.c.h.b16 %v21
  %v41 = vunpack.c.l.b16 %v22
  %v42 = vunpack.c.h.b16 %v22
  %v43 = vunpack.c.l.b16 %v23
  %v44 = vunpack.c.h.b16 %v23
  %v45 = vunpack.c.l.b16 %v24
  %v46 = vunpack.c.h.b16 %v24
  %v47 = vunpack.c.l.b16 %v25
  %v48 = vunpack.c.h.b16 %v25
  %v49 = vunpack.c.l.b16 %v26
  %v50 = vunpack.c.h.b16 %v26
  %v51 = vpack.c.b16 %v39, %v35
  %v52 = vpack.c.b16 %v40, %v36
  %v53 = vpack.c.b16 %v41, %v37
  %v54 = vpack.c.b16 %v42, %v38
  %v55 = vpack.c.b16 %v47, %v43
  %v56 = vpack.c.b16 %v48, %v44
  %v57 = vpack.c.b16 %v49, %v45
  %v58 = vpack.c.b16 %v50, %v46
  %vm63 = vcmask 220160
  %v65 = vsel %vm63, %v18, 0
  %vm67 = vcmask 1044480
  %vm68 = vcmask 1045504
  %v69 = vsel %vm67, 4294967295, 65535
  %v70 = vsel %vm68, %v69, 0
  %v72 = vand.u32 %v55, %v70
  %v75 = vand.u32 %v56, %v70
  %v78 = vand.u32 %v57, %v70
  %v81 = vand.u32 %v58, %v70
  %83 = vmatprep.subr.bf16.mxu0 %v52
  %84 = vmatpush1.bf16.msra.mxu0 %v51
  %85 = vmatprep.subr.bf16.mxu0 %v75
  %86 = vmatpush1.bf16.msra.mxu0 %v72
  %87 = vmatprep.subr.bf16.mxu0 0
  %88 = vmatpush1.bf16.msra.mxu0 0
  %89 = vmatprep.subr.bf16.mxu0 0
  %90 = vmatpush1.bf16.msra.mxu0 0
  %91 = vmatprep.subr.bf16.mxu0 0
  %92 = vmatpush1.bf16.msra.mxu0 0
  %93 = vmatprep.subr.bf16.mxu0 0
  %94 = vmatpush1.bf16.msra.mxu0 0
  %95 = vmatprep.subr.bf16.mxu0 0
  %96 = vmatpush1.bf16.msra.mxu0 0
  %97 = vmatprep.subr.bf16.mxu0 0
  %98 = vmatpush1.bf16.msra.mxu0 0
  %99 = vmatprep.subr.bf16.mxu0 0
  %100 = vmatpush1.bf16.msra.mxu0 0
  %101 = vmatprep.subr.bf16.mxu0 0
  %102 = vmatpush1.bf16.msra.mxu0 0
  %103 = vmatprep.subr.bf16.mxu0 0
  %104 = vmatpush1.bf16.msra.mxu0 0
  %105 = vmatprep.subr.bf16.mxu0 0
  %106 = vmatpush1.bf16.msra.mxu0 0
  %107 = vmatprep.subr.bf16.mxu0 0
  %108 = vmatpush1.bf16.msra.mxu0 0
  %109 = vmatprep.subr.bf16.mxu0 0
  %110 = vmatpush1.bf16.msra.mxu0 0
  %111 = vmatprep.subr.bf16.mxu0 0
  %112 = vmatpush1.bf16.msra.mxu0 0
  %113 = vmatprep.subr.bf16.mxu0 0
  %114 = vmatpush1.bf16.msra.mxu0 0
  %115 = vmatprep.mubr.bf16.mxu0 0
  %116 = vmatmul.mubr.bf16.gmra.mrb[0].mxu0 %v65
  %v117 = vpop.f32.mrb[0].mxu0
  %v118 = vadd.f32 0.0, %v117
  %v119 = vpop.f32.mrb[0].mxu0
  %v120 = vadd.f32 0.0, %v119
  %v121 = vpop.f32.mrb[0].mxu0
  %v122 = vpop.f32.mrb[0].mxu0
  %123 = vdwg.mxu0
  %124 = vmatprep.subr.bf16.mxu0 %v54
  %125 = vmatpush1.bf16.msra.mxu0 %v53
  %126 = vmatprep.subr.bf16.mxu0 %v81
  %127 = vmatpush1.bf16.msra.mxu0 %v78
  %128 = vmatprep.subr.bf16.mxu0 0
  %129 = vmatpush1.bf16.msra.mxu0 0
  %130 = vmatprep.subr.bf16.mxu0 0
  %131 = vmatpush1.bf16.msra.mxu0 0
  %132 = vmatprep.subr.bf16.mxu0 0
  %133 = vmatpush1.bf16.msra.mxu0 0
  %134 = vmatprep.subr.bf16.mxu0 0
  %135 = vmatpush1.bf16.msra.mxu0 0
  %136 = vmatprep.subr.bf16.mxu0 0
  %137 = vmatpush1.bf16.msra.mxu0 0
  %138 = vmatprep.subr.bf16.mxu0 0
  %139 = vmatpush1.bf16.msra.mxu0 0
  %140 = vmatprep.subr.bf16.mxu0 0
  %141 = vmatpush1.bf16.msra.mxu0 0
  %142 = vmatprep.subr.bf16.mxu0 0
  %143 = vmatpush1.bf16.msra.mxu0 0
  %144 = vmatprep.subr.bf16.mxu0 0
  %145 = vmatpush1.bf16.msra.mxu0 0
  %146 = vmatprep.subr.bf16.mxu0 0
  %147 = vmatpush1.bf16.msra.mxu0 0
  %148 = vmatprep.subr.bf16.mxu0 0
  %149 = vmatpush1.bf16.msra.mxu0 0
  %150 = vmatprep.subr.bf16.mxu0 0
  %151 = vmatpush1.bf16.msra.mxu0 0
  %152 = vmatprep.subr.bf16.mxu0 0
  %153 = vmatpush1.bf16.msra.mxu0 0
  %154 = vmatprep.subr.bf16.mxu0 0
  %155 = vmatpush1.bf16.msra.mxu0 0
  %156 = vmatprep.mubr.bf16.mxu0 0
  %157 = vmatmul.mubr.bf16.gmra.mrb[0].mxu0 %v65
  %v158 = vpop.f32.mrb[0].mxu0
  %v159 = vadd.f32 0.0, %v158
  %v160 = vpop.f32.mrb[0].mxu0
  %v161 = vadd.f32 0.0, %v160
  %v162 = vpop.f32.mrb[0].mxu0
  %v163 = vpop.f32.mrb[0].mxu0
  %164 = vdwg.mxu0
  %v165 = vld [vmem:[%s2] sm:$0x3]
  %v166 = vld [vmem:[%s3] sm:$0x3]
  %vm167 = vcmask 1041408
  %v168 = vsel %vm167, %v118, 0.0
  %v169 = vsel %vm167, %v120, 0.0
  %v170 = vadd.f32 %v168, %v169
  %171 = vadd.xlane.f32.xlu0 %v170
  %v172 = vpop.xlane.xlu0 %171
  %v173 = vrcp.pop 256.0
  %v174 = vmul.f32 %v172, %v173
  %v175 = vsub.f32 %v118, %v174
  %v176 = vsub.f32 %v120, %v174
  %v177 = vmul.f32 %v175, %v175
  %v178 = vmul.f32 %v176, %v176
  %v179 = vsel %vm167, %v177, 0.0
  %v180 = vsel %vm167, %v178, 0.0
  %v181 = vadd.f32 %v179, %v180
  %182 = vadd.xlane.f32.xlu0 %v181
  %v183 = vpop.xlane.xlu0 %182
  %v184 = vmul.f32 %v183, %v173
  %v185 = vadd.f32 %v184, 1e-05
  %v186 = vrsqrt.pop %v185
  %v187 = vmul.f32 %v165, %v186
  %189 = vset.pattern.permute.xlu0 0
  %190 = vperm.xlu0 %189, %v187
  %v191 = vpop.permute.xlu0 %190
  %v193 = vmul.f32 %v175, %v191
  %v194 = vmul.f32 %v176, %v191
  %196 = vset.pattern.permute.xlu0 0
  %197 = vperm.xlu0 %196, %v166
  %v198 = vpop.permute.xlu0 %197
  %v200 = vadd.f32 %v193, %v198
  %v201 = vadd.f32 %v194, %v198
  %v202 = vmax.f32 %v200, 0.0
  %v203 = vmax.f32 %v201, 0.0
  %v204 = vsel %vm167, %v159, 0.0
  %v205 = vsel %vm167, %v161, 0.0
  %v206 = vadd.f32 %v204, %v205
  %207 = vadd.xlane.f32.xlu0 %v206
  %v208 = vpop.xlane.xlu0 %207
  %v209 = vmul.f32 %v208, %v173
  %v210 = vsub.f32 %v159, %v209
  %v211 = vsub.f32 %v161, %v209
  %v212 = vmul.f32 %v210, %v210
  %v213 = vmul.f32 %v211, %v211
  %v214 = vsel %vm167, %v212, 0.0
  %v215 = vsel %vm167, %v213, 0.0
  %v216 = vadd.f32 %v214, %v215
  %217 = vadd.xlane.f32.xlu0 %v216
  %v218 = vpop.xlane.xlu0 %217
  %v219 = vmul.f32 %v218, %v173
  %v220 = vadd.f32 %v219, 1e-05
  %v221 = vrsqrt.pop %v220
  %v222 = vmul.f32 %v165, %v221
  %224 = vset.pattern.permute.xlu0 0
  %225 = vperm.xlu0 %224, %v222
  %v226 = vpop.permute.xlu0 %225
  %v228 = vmul.f32 %v210, %v226
  %v229 = vmul.f32 %v211, %v226
  %v230 = vadd.f32 %v228, %v198
  %v231 = vadd.f32 %v229, %v198
  %v232 = vmax.f32 %v230, 0.0
  %v233 = vmax.f32 %v231, 0.0
  %v234 = vpack.c.bf16 %v202, %v202
  %v235 = vpack.c.bf16 %v203, %v203
  %v236 = vpack.c.bf16 %v232, %v232
  %v237 = vpack.c.bf16 %v233, %v233
  %v242 = vcombine.low %v234, %v235
  %v243 = vcombine.low %v236, %v237
  %v245 = vunpack.c.l.s4 1966171168
  %v246 = vunpack.c.0.s8 %v245
  %v247 = vlaneseq
  %v248 = vshrl.u32 %v247, 7
  %v249 = vsub.s32 %v246, %v248
  %v250 = vrot.slane %v242, %v249
  %v252 = vunpack.c.l.s4 1966171168
  %v253 = vunpack.c.0.s8 %v252
  %v254 = vlaneseq
  %v255 = vshrl.u32 %v254, 7
  %v256 = vsub.s32 %v253, %v255
  %v257 = vrot.slane %v243, %v256
  %v258 = vcombine.low %v250, %v257
  %v260 = vunpack.c.l.s4 1966171168
  %v261 = vunpack.c.0.s8 %v260
  %v262 = vlaneseq
  %v263 = vshrl.u32 %v262, 7
  %v264 = vsub.s32 %v261, %v263
  %v265 = vrot.slane %v258, %v264
  %267 = vst [vmem:[%s4] sm:$0xf] %v265
  // Predicated region
  $region18: #{ae_forward.7} parent=0 // pred_check
    _
  $region19: #{ae_forward.7} parent=0 // pred_check_branch
    %269 = sbr.rel (0) target = $region21
  $region20: #{ae_forward.7} parent=0 // pred_region
    _
  $region21: #{ae_forward.7} parent=0 // pred_fallthru
    _
  // Predicated region
  $region22: #{ae_forward.7} parent=0 // pred_check
    _
  $region23: #{ae_forward.7} parent=0 // pred_check_branch
    %271 = sbr.rel (0) target = $region25
  $region24: #{ae_forward.7} parent=0 // pred_region
    _
  $region25: #{ae_forward.7} parent=0 // pred_fallthru
    _

// kernel: ae_forward.8
$region0: #{ae_forward.8}
  #allocation0 [shape = 'u32[]', space=smem, size = 0x4, offset = 0x4, fixed_abs, tag = 'smem constant byte address 0x4 - core index']
  #allocation1 [shape = 'u32[144,128]{1,0:T(1,128)}', space=vmem, size = 0x12000, scoped, tag = 'internal scratch']
  %s0 = inlined_call_operand.vmem [shape: bf16[18,128], index: 0, kind: input, shape index: {}]
  %s1 = inlined_call_operand.vmem [shape: bf16[4,18], index: 1, kind: input, shape index: {}]
  %s2 = inlined_call_operand.vmem [shape: f32[4,1], index: 2, kind: input, shape index: {}]
  %s3 = inlined_call_operand.vmem [shape: f32[4,1], index: 3, kind: input, shape index: {}]
  %s4 = inlined_call_operand.vmem [shape: bf16[4,128], index: 4, kind: output, shape index: {}]
  %s5 = sld [smem:[#allocation0]]
  $region26: #{ae_forward.8} parent=0
    _
  %s7 = ssub.s32 1, %s5
  %s8 = scalar_select 0, %s7, %s5
  // Predicated region
  $region2: #{ae_forward.8} parent=0 // pred_check
    _
  $region3: #{ae_forward.8} parent=0 // pred_check_branch
    %10 = sbr.rel (0) target = $region5
  $region4: #{ae_forward.8} parent=0 // pred_region
    _
  $region5: #{ae_forward.8} parent=0 // pred_fallthru
    _
  // Predicated region
  $region6: #{ae_forward.8} parent=0 // pred_check
    _
  $region7: #{ae_forward.8} parent=0 // pred_check_branch
    %12 = sbr.rel (0) target = $region9
  $region8: #{ae_forward.8} parent=0 // pred_region
    _
  $region9: #{ae_forward.8} parent=0 // pred_fallthru
    _
  // Predicated region
  $region10: #{ae_forward.8} parent=0 // pred_check
    _
  $region11: #{ae_forward.8} parent=0 // pred_check_branch
    %14 = sbr.rel (0) target = $region13
  $region12: #{ae_forward.8} parent=0 // pred_region
    _
  $region13: #{ae_forward.8} parent=0 // pred_fallthru
    _
  // Predicated region
  $region14: #{ae_forward.8} parent=0 // pred_check
    _
  $region15: #{ae_forward.8} parent=0 // pred_check_branch
    %16 = sbr.rel (0) target = $region17
  $region16: #{ae_forward.8} parent=0 // pred_region
    _
  $region17: #{ae_forward.8} parent=0 // pred_fallthru
    _
  %v18 = vld [vmem:[%s1] sm:$0x3]
  %v19 = vld [vmem:[%s0] sm:$0xf]
  %v20 = vld [vmem:[%s0 + $0x4] sm:$0xf]
  %v21 = vld [vmem:[%s0 + $0x8] sm:$0x1]
  %v25 = vunpack.c.l.b16 %v19
  %v26 = vunpack.c.l.b16 %v20
  %v27 = vunpack.c.l.b16 %v21
  %v28 = vpack.c.b16 %v26, %v25
  %v29 = vpack.c.b16 %v27, %v27
  %vm31 = vcmask 146432
  %v33 = vsel %vm31, %v18, 0
  %vm35 = vcmask 1040384
  %v37 = vsel %vm35, %v29, 0
  %39 = vmatprep.subr.bf16.mxu0 0
  %40 = vmatpush1.bf16.msra.mxu0 %v28
  %41 = vmatprep.subr.bf16.mxu0 0
  %42 = vmatpush1.bf16.msra.mxu0 %v37
  %43 = vmatprep.subr.bf16.mxu0 0
  %44 = vmatpush1.bf16.msra.mxu0 0
  %45 = vmatprep.subr.bf16.mxu0 0
  %46 = vmatpush1.bf16.msra.mxu0 0
  %47 = vmatprep.subr.bf16.mxu0 0
  %48 = vmatpush1.bf16.msra.mxu0 0
  %49 = vmatprep.subr.bf16.mxu0 0
  %50 = vmatpush1.bf16.msra.mxu0 0
  %51 = vmatprep.subr.bf16.mxu0 0
  %52 = vmatpush1.bf16.msra.mxu0 0
  %53 = vmatprep.subr.bf16.mxu0 0
  %54 = vmatpush1.bf16.msra.mxu0 0
  %55 = vmatprep.subr.bf16.mxu0 0
  %56 = vmatpush1.bf16.msra.mxu0 0
  %57 = vmatprep.subr.bf16.mxu0 0
  %58 = vmatpush1.bf16.msra.mxu0 0
  %59 = vmatprep.subr.bf16.mxu0 0
  %60 = vmatpush1.bf16.msra.mxu0 0
  %61 = vmatprep.subr.bf16.mxu0 0
  %62 = vmatpush1.bf16.msra.mxu0 0
  %63 = vmatprep.subr.bf16.mxu0 0
  %64 = vmatpush1.bf16.msra.mxu0 0
  %65 = vmatprep.subr.bf16.mxu0 0
  %66 = vmatpush1.bf16.msra.mxu0 0
  %67 = vmatprep.subr.bf16.mxu0 0
  %68 = vmatpush1.bf16.msra.mxu0 0
  %69 = vmatprep.subr.bf16.mxu0 0
  %70 = vmatpush1.bf16.msra.mxu0 0
  %71 = vmatprep.mubr.bf16.mxu0 0
  %72 = vmatmul.mubr.bf16.gmra.mrb[0].mxu0 %v33
  %v73 = vpop.f32.mrb[0].mxu0
  %v74 = vadd.f32 0.0, %v73
  %v75 = vpop.f32.mrb[0].mxu0
  %v76 = vpop.f32.mrb[0].mxu0
  %v77 = vpop.f32.mrb[0].mxu0
  %78 = vdwg.mxu0
  %v79 = vld [vmem:[%s2] sm:$0xf]
  %v80 = vld [vmem:[%s3] sm:$0xf]
  %vm81 = vcmask 519168
  %v82 = vsel %vm81, %v74, 0.0
  %83 = vadd.xlane.f32.xlu0 %v82
  %v84 = vpop.xlane.xlu0 %83
  %v85 = vrcp.pop 64.0
  %v86 = vmul.f32 %v84, %v85
  %v87 = vsub.f32 %v74, %v86
  %v88 = vmul.f32 %v87, %v87
  %v89 = vsel %vm81, %v88, 0.0
  %90 = vadd.xlane.f32.xlu0 %v89
  %v91 = vpop.xlane.xlu0 %90
  %v92 = vmul.f32 %v91, %v85
  %v93 = vadd.f32 %v92, 1e-05
  %v94 = vrsqrt.pop %v93
  %v95 = vmul.f32 %v79, %v94
  %97 = vset.pattern.permute.xlu0 0
  %98 = vperm.xlu0 %97, %v95
  %v99 = vpop.permute.xlu0 %98
  %v101 = vmul.f32 %v87, %v99
  %103 = vset.pattern.permute.xlu0 0
  %104 = vperm.xlu0 %103, %v80
  %v105 = vpop.permute.xlu0 %104
  %v107 = vadd.f32 %v101, %v105
  %v108 = vmax.f32 %v107, 0.0
  %110 = vrot.lane.b32.xlu0 %v74, 64
  %v111 = vpop.permute.xlu0 %110
  %v113 = vsel %vm81, %v111, 0.0
  %114 = vadd.xlane.f32.xlu0 %v113
  %v115 = vpop.xlane.xlu0 %114
  %v116 = vmul.f32 %v115, %v85
  %v117 = vsub.f32 %v74, %v116
  %v118 = vmul.f32 %v117, %v117
  %120 = vrot.lane.b32.xlu0 %v118, 64
  %v121 = vpop.permute.xlu0 %120
  %v123 = vsel %vm81, %v121, 0.0
  %124 = vadd.xlane.f32.xlu0 %v123
  %v125 = vpop.xlane.xlu0 %124
  %v126 = vmul.f32 %v125, %v85
  %v127 = vadd.f32 %v126, 1e-05
  %v128 = vrsqrt.pop %v127
  %v129 = vmul.f32 %v79, %v128
  %131 = vset.pattern.permute.xlu0 0
  %132 = vperm.xlu0 %131, %v129
  %v133 = vpop.permute.xlu0 %132
  %v135 = vmul.f32 %v117, %v133
  %v136 = vadd.f32 %v135, %v105
  %v137 = vmax.f32 %v136, 0.0
  %vm138 = vcmask 523264
  %v139 = vsel %vm138, %v108, %v137
  %v140 = vpack.c.bf16 %v139, %v139
  %141 = vst [vmem:[%s4] sm:$0x3] %v140
  // Predicated region
  $region18: #{ae_forward.8} parent=0 // pred_check
    _
  $region19: #{ae_forward.8} parent=0 // pred_check_branch
    %143 = sbr.rel (0) target = $region21
  $region20: #{ae_forward.8} parent=0 // pred_region
    _
  $region21: #{ae_forward.8} parent=0 // pred_fallthru
    _
  // Predicated region
  $region22: #{ae_forward.8} parent=0 // pred_check
    _
  $region23: #{ae_forward.8} parent=0 // pred_check_branch
    %145 = sbr.rel (0) target = $region25
  $region24: #{ae_forward.8} parent=0 // pred_region
    _
  $region25: #{ae_forward.8} parent=0 // pred_fallthru
    _

// kernel: ae_forward.9
$region0: #{ae_forward.9}
  #allocation0 [shape = 'u32[]', space=smem, size = 0x4, offset = 0x4, fixed_abs, tag = 'smem constant byte address 0x4 - core index']
  #allocation1 [shape = 'u32[144,128]{1,0:T(1,128)}', space=vmem, size = 0x12000, scoped, tag = 'internal scratch']
  %s0 = inlined_call_operand.vmem [shape: bf16[36,32], index: 0, kind: input, shape index: {}]
  %s1 = inlined_call_operand.vmem [shape: bf16[8,36], index: 1, kind: input, shape index: {}]
  %s2 = inlined_call_operand.vmem [shape: f32[8,1], index: 2, kind: input, shape index: {}]
  %s3 = inlined_call_operand.vmem [shape: f32[8,1], index: 3, kind: input, shape index: {}]
  %s4 = inlined_call_operand.vmem [shape: bf16[8,32], index: 4, kind: output, shape index: {}]
  %s5 = sld [smem:[#allocation0]]
  $region26: #{ae_forward.9} parent=0
    _
  %s7 = ssub.s32 1, %s5
  %s8 = scalar_select 0, %s7, %s5
  // Predicated region
  $region2: #{ae_forward.9} parent=0 // pred_check
    _
  $region3: #{ae_forward.9} parent=0 // pred_check_branch
    %10 = sbr.rel (0) target = $region5
  $region4: #{ae_forward.9} parent=0 // pred_region
    _
  $region5: #{ae_forward.9} parent=0 // pred_fallthru
    _
  // Predicated region
  $region6: #{ae_forward.9} parent=0 // pred_check
    _
  $region7: #{ae_forward.9} parent=0 // pred_check_branch
    %12 = sbr.rel (0) target = $region9
  $region8: #{ae_forward.9} parent=0 // pred_region
    _
  $region9: #{ae_forward.9} parent=0 // pred_fallthru
    _
  // Predicated region
  $region10: #{ae_forward.9} parent=0 // pred_check
    _
  $region11: #{ae_forward.9} parent=0 // pred_check_branch
    %14 = sbr.rel (0) target = $region13
  $region12: #{ae_forward.9} parent=0 // pred_region
    _
  $region13: #{ae_forward.9} parent=0 // pred_fallthru
    _
  // Predicated region
  $region14: #{ae_forward.9} parent=0 // pred_check
    _
  $region15: #{ae_forward.9} parent=0 // pred_check_branch
    %16 = sbr.rel (0) target = $region17
  $region16: #{ae_forward.9} parent=0 // pred_region
    _
  $region17: #{ae_forward.9} parent=0 // pred_fallthru
    _
  %v18 = vld [vmem:[%s1] sm:$0xf]
  %v19 = vld [vmem:[%s0] sm:$0xf]
  %v20 = vld [vmem:[%s0 + $0x4] sm:$0xf]
  %v21 = vld [vmem:[%s0 + $0x8] sm:$0xf]
  %v22 = vld [vmem:[%s0 + $0xc] sm:$0xf]
  %v23 = vld [vmem:[%s0 + $0x10] sm:$0x3]
  %v29 = vunpack.c.l.b16 %v19
  %v30 = vunpack.c.l.b16 %v20
  %v31 = vunpack.c.l.b16 %v21
  %v32 = vunpack.c.l.b16 %v22
  %v33 = vunpack.c.l.b16 %v23
  %v34 = vpack.c.b16 %v30, %v29
  %v35 = vpack.c.b16 %v32, %v31
  %v36 = vpack.c.b16 %v33, %v33
  %vm39 = vcmask 293888
  %v41 = vsel %vm39, %v18, 0
  %vm43 = vcmask 1041408
  %v45 = vsel %vm43, %v36, 0
  %47 = vmatprep.subr.bf16.mxu0 0
  %48 = vmatpush1.bf16.msra.mxu0 %v34
  %49 = vmatprep.subr.bf16.mxu0 0
  %50 = vmatpush1.bf16.msra.mxu0 %v35
  %51 = vmatprep.subr.bf16.mxu0 0
  %52 = vmatpush1.bf16.msra.mxu0 %v45
  %53 = vmatprep.subr.bf16.mxu0 0
  %54 = vmatpush1.bf16.msra.mxu0 0
  %55 = vmatprep.subr.bf16.mxu0 0
  %56 = vmatpush1.bf16.msra.mxu0 0
  %57 = vmatprep.subr.bf16.mxu0 0
  %58 = vmatpush1.bf16.msra.mxu0 0
  %59 = vmatprep.subr.bf16.mxu0 0
  %60 = vmatpush1.bf16.msra.mxu0 0
  %61 = vmatprep.subr.bf16.mxu0 0
  %62 = vmatpush1.bf16.msra.mxu0 0
  %63 = vmatprep.subr.bf16.mxu0 0
  %64 = vmatpush1.bf16.msra.mxu0 0
  %65 = vmatprep.subr.bf16.mxu0 0
  %66 = vmatpush1.bf16.msra.mxu0 0
  %67 = vmatprep.subr.bf16.mxu0 0
  %68 = vmatpush1.bf16.msra.mxu0 0
  %69 = vmatprep.subr.bf16.mxu0 0
  %70 = vmatpush1.bf16.msra.mxu0 0
  %71 = vmatprep.subr.bf16.mxu0 0
  %72 = vmatpush1.bf16.msra.mxu0 0
  %73 = vmatprep.subr.bf16.mxu0 0
  %74 = vmatpush1.bf16.msra.mxu0 0
  %75 = vmatprep.subr.bf16.mxu0 0
  %76 = vmatpush1.bf16.msra.mxu0 0
  %77 = vmatprep.subr.bf16.mxu0 0
  %78 = vmatpush1.bf16.msra.mxu0 0
  %79 = vmatprep.mubr.bf16.mxu0 0
  %80 = vmatmul.mubr.bf16.gmra.mrb[0].mxu0 %v41
  %v81 = vpop.f32.mrb[0].mxu0
  %v82 = vadd.f32 0.0, %v81
  %v83 = vpop.f32.mrb[0].mxu0
  %v84 = vpop.f32.mrb[0].mxu0
  %v85 = vpop.f32.mrb[0].mxu0
  %86 = vdwg.mxu0
  %v87 = vld [vmem:[%s2] sm:$0xff]
  %v88 = vld [vmem:[%s3] sm:$0xff]
  %vm89 = vcmask 130048
  %v90 = vsel %vm89, %v82, 0.0
  %91 = vadd.xlane.f32.xlu0 %v90
  %v92 = vpop.xlane.xlu0 %91
  %v93 = vrcp.pop 16.0
  %v94 = vmul.f32 %v92, %v93
  %v95 = vsub.f32 %v82, %v94
  %v96 = vmul.f32 %v95, %v95
  %v97 = vsel %vm89, %v96, 0.0
  %98 = vadd.xlane.f32.xlu0 %v97
  %v99 = vpop.xlane.xlu0 %98
  %v100 = vmul.f32 %v99, %v93
  %v101 = vadd.f32 %v100, 1e-05
  %v102 = vrsqrt.pop %v101
  %v103 = vmul.f32 %v87, %v102
  %105 = vset.pattern.permute.xlu0 0
  %106 = vperm.xlu0 %105, %v103
  %v107 = vpop.permute.xlu0 %106
  %v109 = vmul.f32 %v95, %v107
  %111 = vset.pattern.permute.xlu0 0
  %112 = vperm.xlu0 %111, %v88
  %v113 = vpop.permute.xlu0 %112
  %v115 = vadd.f32 %v109, %v113
  %v116 = vmax.f32 %v115, 0.0
  %118 = vrot.lane.b32.xlu0 %v82, 112
  %v119 = vpop.permute.xlu0 %118
  %v121 = vsel %vm89, %v119, 0.0
  %122 = vadd.xlane.f32.xlu0 %v121
  %v123 = vpop.xlane.xlu0 %122
  %v124 = vmul.f32 %v123, %v93
  %v125 = vsub.f32 %v82, %v124
  %v126 = vmul.f32 %v125, %v125
  %128 = vrot.lane.b32.xlu0 %v126, 112
  %v129 = vpop.permute.xlu0 %128
  %v131 = vsel %vm89, %v129, 0.0
  %132 = vadd.xlane.f32.xlu0 %v131
  %v133 = vpop.xlane.xlu0 %132
  %v134 = vmul.f32 %v133, %v93
  %v135 = vadd.f32 %v134, 1e-05
  %v136 = vrsqrt.pop %v135
  %v137 = vmul.f32 %v87, %v136
  %139 = vset.pattern.permute.xlu0 0
  %140 = vperm.xlu0 %139, %v137
  %v141 = vpop.permute.xlu0 %140
  %v143 = vmul.f32 %v125, %v141
  %v144 = vadd.f32 %v143, %v113
  %v145 = vmax.f32 %v144, 0.0
  %v146 = vsel %vm89, %v116, %v145
  %v147 = vpack.c.bf16 %v146, %v146
  %vm148 = vcmask 257024
  %149 = vst.msk [vmem:[%s4] sm:$0xf] %vm148, %v147
  // Predicated region
  $region18: #{ae_forward.9} parent=0 // pred_check
    _
  $region19: #{ae_forward.9} parent=0 // pred_check_branch
    %151 = sbr.rel (0) target = $region21
  $region20: #{ae_forward.9} parent=0 // pred_region
    _
  $region21: #{ae_forward.9} parent=0 // pred_fallthru
    _
  // Predicated region
  $region22: #{ae_forward.9} parent=0 // pred_check
    _
  $region23: #{ae_forward.9} parent=0 // pred_check_branch
    %153 = sbr.rel (0) target = $region25
  $region24: #{ae_forward.9} parent=0 // pred_region
    _
  $region25: #{ae_forward.9} parent=0 // pred_fallthru
    _

// kernel: ae_forward.10
$region0: #{ae_forward.10}
  #allocation0 [shape = 'u32[]', space=smem, size = 0x4, offset = 0x4, fixed_abs, tag = 'smem constant byte address 0x4 - core index']
  #allocation1 [shape = 'u32[144,128]{1,0:T(1,128)}', space=vmem, size = 0x12000, scoped, tag = 'internal scratch']
  %s0 = inlined_call_operand.vmem [shape: bf16[128,32], index: 0, kind: input, shape index: {}]
  %s1 = inlined_call_operand.vmem [shape: bf16[8,128], index: 1, kind: input, shape index: {}]
  %s2 = inlined_call_operand.vmem [shape: f32[8,1], index: 2, kind: input, shape index: {}]
  %s3 = inlined_call_operand.vmem [shape: f32[8,1], index: 3, kind: input, shape index: {}]
  %s4 = inlined_call_operand.vmem [shape: bf16[8,32], index: 4, kind: output, shape index: {}]
  %s5 = sld [smem:[#allocation0]]
  $region26: #{ae_forward.10} parent=0
    _
  %s7 = ssub.s32 1, %s5
  %s8 = scalar_select 0, %s7, %s5
  // Predicated region
  $region2: #{ae_forward.10} parent=0 // pred_check
    _
  $region3: #{ae_forward.10} parent=0 // pred_check_branch
    %10 = sbr.rel (0) target = $region5
  $region4: #{ae_forward.10} parent=0 // pred_region
    _
  $region5: #{ae_forward.10} parent=0 // pred_fallthru
    _
  // Predicated region
  $region6: #{ae_forward.10} parent=0 // pred_check
    _
  $region7: #{ae_forward.10} parent=0 // pred_check_branch
    %12 = sbr.rel (0) target = $region9
  $region8: #{ae_forward.10} parent=0 // pred_region
    _
  $region9: #{ae_forward.10} parent=0 // pred_fallthru
    _
  // Predicated region
  $region10: #{ae_forward.10} parent=0 // pred_check
    _
  $region11: #{ae_forward.10} parent=0 // pred_check_branch
    %14 = sbr.rel (0) target = $region13
  $region12: #{ae_forward.10} parent=0 // pred_region
    _
  $region13: #{ae_forward.10} parent=0 // pred_fallthru
    _
  // Predicated region
  $region14: #{ae_forward.10} parent=0 // pred_check
    _
  $region15: #{ae_forward.10} parent=0 // pred_check_branch
    %16 = sbr.rel (0) target = $region17
  $region16: #{ae_forward.10} parent=0 // pred_region
    _
  $region17: #{ae_forward.10} parent=0 // pred_fallthru
    _
  %v18 = vld [vmem:[%s1] sm:$0xf]
  %v19 = vld [vmem:[%s0] sm:$0xf]
  %v20 = vld [vmem:[%s0 + $0x4] sm:$0xf]
  %v21 = vld [vmem:[%s0 + $0x8] sm:$0xf]
  %v22 = vld [vmem:[%s0 + $0xc] sm:$0xf]
  %v23 = vld [vmem:[%s0 + $0x10] sm:$0xf]
  %v24 = vld [vmem:[%s0 + $0x14] sm:$0xf]
  %v25 = vld [vmem:[%s0 + $0x18] sm:$0xf]
  %v26 = vld [vmem:[%s0 + $0x1c] sm:$0xf]
  %v27 = vld [vmem:[%s0 + $0x20] sm:$0xf]
  %v28 = vld [vmem:[%s0 + $0x24] sm:$0xf]
  %v29 = vld [vmem:[%s0 + $0x28] sm:$0xf]
  %v30 = vld [vmem:[%s0 + $0x2c] sm:$0xf]
  %v31 = vld [vmem:[%s0 + $0x30] sm:$0xf]
  %v32 = vld [vmem:[%s0 + $0x34] sm:$0xf]
  %v33 = vld [vmem:[%s0 + $0x38] sm:$0xf]
  %v34 = vld [vmem:[%s0 + $0x3c] sm:$0xf]
  %v51 = vunpack.c.l.b16 %v19
  %v52 = vunpack.c.l.b16 %v20
  %v53 = vunpack.c.l.b16 %v21
  %v54 = vunpack.c.l.b16 %v22
  %v55 = vunpack.c.l.b16 %v23
  %v56 = vunpack.c.l.b16 %v24
  %v57 = vunpack.c.l.b16 %v25
  %v58 = vunpack.c.l.b16 %v26
  %v59 = vunpack.c.l.b16 %v27
  %v60 = vunpack.c.l.b16 %v28
  %v61 = vunpack.c.l.b16 %v29
  %v62 = vunpack.c.l.b16 %v30
  %v63 = vunpack.c.l.b16 %v31
  %v64 = vunpack.c.l.b16 %v32
  %v65 = vunpack.c.l.b16 %v33
  %v66 = vunpack.c.l.b16 %v34
  %v67 = vpack.c.b16 %v52, %v51
  %v68 = vpack.c.b16 %v54, %v53
  %v69 = vpack.c.b16 %v56, %v55
  %v70 = vpack.c.b16 %v58, %v57
  %v71 = vpack.c.b16 %v60, %v59
  %v72 = vpack.c.b16 %v62, %v61
  %v73 = vpack.c.b16 %v64, %v63
  %v74 = vpack.c.b16 %v66, %v65
  %83 = vmatprep.subr.bf16.mxu0 0
  %84 = vmatpush1.bf16.msra.mxu0 %v67
  %85 = vmatprep.subr.bf16.mxu0 0
  %86 = vmatpush1.bf16.msra.mxu0 %v68
  %87 = vmatprep.subr.bf16.mxu0 0
  %88 = vmatpush1.bf16.msra.mxu0 %v69
  %89 = vmatprep.subr.bf16.mxu0 0
  %90 = vmatpush1.bf16.msra.mxu0 %v70
  %91 = vmatprep.subr.bf16.mxu0 0
  %92 = vmatpush1.bf16.msra.mxu0 %v71
  %93 = vmatprep.subr.bf16.mxu0 0
  %94 = vmatpush1.bf16.msra.mxu0 %v72
  %95 = vmatprep.subr.bf16.mxu0 0
  %96 = vmatpush1.bf16.msra.mxu0 %v73
  %97 = vmatprep.subr.bf16.mxu0 0
  %98 = vmatpush1.bf16.msra.mxu0 %v74
  %99 = vmatprep.subr.bf16.mxu0 0
  %100 = vmatpush1.bf16.msra.mxu0 0
  %101 = vmatprep.subr.bf16.mxu0 0
  %102 = vmatpush1.bf16.msra.mxu0 0
  %103 = vmatprep.subr.bf16.mxu0 0
  %104 = vmatpush1.bf16.msra.mxu0 0
  %105 = vmatprep.subr.bf16.mxu0 0
  %106 = vmatpush1.bf16.msra.mxu0 0
  %107 = vmatprep.subr.bf16.mxu0 0
  %108 = vmatpush1.bf16.msra.mxu0 0
  %109 = vmatprep.subr.bf16.mxu0 0
  %110 = vmatpush1.bf16.msra.mxu0 0
  %111 = vmatprep.subr.bf16.mxu0 0
  %112 = vmatpush1.bf16.msra.mxu0 0
  %113 = vmatprep.subr.bf16.mxu0 0
  %114 = vmatpush1.bf16.msra.mxu0 0
  %115 = vmatprep.mubr.bf16.mxu0 0
  %116 = vmatmul.mubr.bf16.gmra.mrb[0].mxu0 %v18
  %v117 = vpop.f32.mrb[0].mxu0
  %v118 = vadd.f32 0.0, %v117
  %v119 = vpop.f32.mrb[0].mxu0
  %v120 = vpop.f32.mrb[0].mxu0
  %v121 = vpop.f32.mrb[0].mxu0
  %122 = vdwg.mxu0
  %v123 = vld [vmem:[%s2] sm:$0xff]
  %v124 = vld [vmem:[%s3] sm:$0xff]
  %vm125 = vcmask 130048
  %v126 = vsel %vm125, %v118, 0.0
  %127 = vadd.xlane.f32.xlu0 %v126
  %v128 = vpop.xlane.xlu0 %127
  %v129 = vrcp.pop 16.0
  %v130 = vmul.f32 %v128, %v129
  %v131 = vsub.f32 %v118, %v130
  %v132 = vmul.f32 %v131, %v131
  %v133 = vsel %vm125, %v132, 0.0
  %134 = vadd.xlane.f32.xlu0 %v133
  %v135 = vpop.xlane.xlu0 %134
  %v136 = vmul.f32 %v135, %v129
  %v137 = vadd.f32 %v136, 1e-05
  %v138 = vrsqrt.pop %v137
  %v139 = vmul.f32 %v123, %v138
  %141 = vset.pattern.permute.xlu0 0
  %142 = vperm.xlu0 %141, %v139
  %v143 = vpop.permute.xlu0 %142
  %v145 = vmul.f32 %v131, %v143
  %147 = vset.pattern.permute.xlu0 0
  %148 = vperm.xlu0 %147, %v124
  %v149 = vpop.permute.xlu0 %148
  %v151 = vadd.f32 %v145, %v149
  %v152 = vmax.f32 %v151, 0.0
  %154 = vrot.lane.b32.xlu0 %v118, 112
  %v155 = vpop.permute.xlu0 %154
  %v157 = vsel %vm125, %v155, 0.0
  %158 = vadd.xlane.f32.xlu0 %v157
  %v159 = vpop.xlane.xlu0 %158
  %v160 = vmul.f32 %v159, %v129
  %v161 = vsub.f32 %v118, %v160
  %v162 = vmul.f32 %v161, %v161
  %164 = vrot.lane.b32.xlu0 %v162, 112
  %v165 = vpop.permute.xlu0 %164
  %v167 = vsel %vm125, %v165, 0.0
  %168 = vadd.xlane.f32.xlu0 %v167
  %v169 = vpop.xlane.xlu0 %168
  %v170 = vmul.f32 %v169, %v129
  %v171 = vadd.f32 %v170, 1e-05
  %v172 = vrsqrt.pop %v171
  %v173 = vmul.f32 %v123, %v172
  %175 = vset.pattern.permute.xlu0 0
  %176 = vperm.xlu0 %175, %v173
  %v177 = vpop.permute.xlu0 %176
  %v179 = vmul.f32 %v161, %v177
  %v180 = vadd.f32 %v179, %v149
  %v181 = vmax.f32 %v180, 0.0
  %v182 = vsel %vm125, %v152, %v181
  %v183 = vpack.c.bf16 %v182, %v182
  %vm184 = vcmask 257024
  %185 = vst.msk [vmem:[%s4] sm:$0xf] %vm184, %v183
  // Predicated region
  $region18: #{ae_forward.10} parent=0 // pred_check
    _
  $region19: #{ae_forward.10} parent=0 // pred_check_branch
    %187 = sbr.rel (0) target = $region21
  $region20: #{ae_forward.10} parent=0 // pred_region
    _
  $region21: #{ae_forward.10} parent=0 // pred_fallthru
    _
  // Predicated region
  $region22: #{ae_forward.10} parent=0 // pred_check
    _
  $region23: #{ae_forward.10} parent=0 // pred_check_branch
    %189 = sbr.rel (0) target = $region25
  $region24: #{ae_forward.10} parent=0 // pred_region
    _
  $region25: #{ae_forward.10} parent=0 // pred_fallthru
    _

// kernel: ae_forward.11
$region0: #{ae_forward.11}
  #allocation0 [shape = 'u32[]', space=smem, size = 0x4, offset = 0x4, fixed_abs, tag = 'smem constant byte address 0x4 - core index']
  #allocation1 [shape = 'u32[144,128]{1,0:T(1,128)}', space=vmem, size = 0x12000, scoped, tag = 'internal scratch']
  %s0 = inlined_call_operand.vmem [shape: bf16[72,32], index: 0, kind: input, shape index: {}]
  %s1 = inlined_call_operand.vmem [shape: bf16[16,72], index: 1, kind: input, shape index: {}]
  %s2 = inlined_call_operand.vmem [shape: f32[4,1], index: 2, kind: input, shape index: {}]
  %s3 = inlined_call_operand.vmem [shape: f32[4,1], index: 3, kind: input, shape index: {}]
  %s4 = inlined_call_operand.vmem [shape: bf16[16,32], index: 4, kind: output, shape index: {}]
  %s5 = sld [smem:[#allocation0]]
  $region26: #{ae_forward.11} parent=0
    _
  %s7 = ssub.s32 1, %s5
  %s8 = scalar_select 0, %s7, %s5
  // Predicated region
  $region2: #{ae_forward.11} parent=0 // pred_check
    _
  $region3: #{ae_forward.11} parent=0 // pred_check_branch
    %10 = sbr.rel (0) target = $region5
  $region4: #{ae_forward.11} parent=0 // pred_region
    _
  $region5: #{ae_forward.11} parent=0 // pred_fallthru
    _
  // Predicated region
  $region6: #{ae_forward.11} parent=0 // pred_check
    _
  $region7: #{ae_forward.11} parent=0 // pred_check_branch
    %12 = sbr.rel (0) target = $region9
  $region8: #{ae_forward.11} parent=0 // pred_region
    _
  $region9: #{ae_forward.11} parent=0 // pred_fallthru
    _
  // Predicated region
  $region10: #{ae_forward.11} parent=0 // pred_check
    _
  $region11: #{ae_forward.11} parent=0 // pred_check_branch
    %14 = sbr.rel (0) target = $region13
  $region12: #{ae_forward.11} parent=0 // pred_region
    _
  $region13: #{ae_forward.11} parent=0 // pred_fallthru
    _
  // Predicated region
  $region14: #{ae_forward.11} parent=0 // pred_check
    _
  $region15: #{ae_forward.11} parent=0 // pred_check_branch
    %16 = sbr.rel (0) target = $region17
  $region16: #{ae_forward.11} parent=0 // pred_region
    _
  $region17: #{ae_forward.11} parent=0 // pred_fallthru
    _
  %v18 = vld [vmem:[%s1] sm:$0xf]
  %v19 = vld [vmem:[%s1 + $0x4] sm:$0xf]
  %v20 = vld [vmem:[%s0] sm:$0xf]
  %v21 = vld [vmem:[%s0 + $0x4] sm:$0xf]
  %v22 = vld [vmem:[%s0 + $0x8] sm:$0xf]
  %v23 = vld [vmem:[%s0 + $0xc] sm:$0xf]
  %v24 = vld [vmem:[%s0 + $0x10] sm:$0xf]
  %v25 = vld [vmem:[%s0 + $0x14] sm:$0xf]
  %v26 = vld [vmem:[%s0 + $0x18] sm:$0xf]
  %v27 = vld [vmem:[%s0 + $0x1c] sm:$0xf]
  %v28 = vld [vmem:[%s0 + $0x20] sm:$0xf]
  %v31 = vunpack.c.l.b16 %v18
  %v32 = vunpack.c.l.b16 %v19
  %v33 = vpack.c.b16 %v32, %v31
  %v43 = vunpack.c.l.b16 %v20
  %v44 = vunpack.c.l.b16 %v21
  %v45 = vunpack.c.l.b16 %v22
  %v46 = vunpack.c.l.b16 %v23
  %v47 = vunpack.c.l.b16 %v24
  %v48 = vunpack.c.l.b16 %v25
  %v49 = vunpack.c.l.b16 %v26
  %v50 = vunpack.c.l.b16 %v27
  %v51 = vunpack.c.l.b16 %v28
  %v52 = vpack.c.b16 %v44, %v43
  %v53 = vpack.c.b16 %v46, %v45
  %v54 = vpack.c.b16 %v48, %v47
  %v55 = vpack.c.b16 %v50, %v49
  %v56 = vpack.c.b16 %v51, %v51
  %vm61 = vcmask 588800
  %v63 = vsel %vm61, %v33, 0
  %vm65 = vcmask 1043456
  %v67 = vsel %vm65, %v56, 0
  %69 = vmatprep.subr.bf16.mxu0 0
  %70 = vmatpush1.bf16.msra.mxu0 %v52
  %71 = vmatprep.subr.bf16.mxu0 0
  %72 = vmatpush1.bf16.msra.mxu0 %v53
  %73 = vmatprep.subr.bf16.mxu0 0
  %74 = vmatpush1.bf16.msra.mxu0 %v54
  %75 = vmatprep.subr.bf16.mxu0 0
  %76 = vmatpush1.bf16.msra.mxu0 %v55
  %77 = vmatprep.subr.bf16.mxu0 0
  %78 = vmatpush1.bf16.msra.mxu0 %v67
  %79 = vmatprep.subr.bf16.mxu0 0
  %80 = vmatpush1.bf16.msra.mxu0 0
  %81 = vmatprep.subr.bf16.mxu0 0
  %82 = vmatpush1.bf16.msra.mxu0 0
  %83 = vmatprep.subr.bf16.mxu0 0
  %84 = vmatpush1.bf16.msra.mxu0 0
  %85 = vmatprep.subr.bf16.mxu0 0
  %86 = vmatpush1.bf16.msra.mxu0 0
  %87 = vmatprep.subr.bf16.mxu0 0
  %88 = vmatpush1.bf16.msra.mxu0 0
  %89 = vmatprep.subr.bf16.mxu0 0
  %90 = vmatpush1.bf16.msra.mxu0 0
  %91 = vmatprep.subr.bf16.mxu0 0
  %92 = vmatpush1.bf16.msra.mxu0 0
  %93 = vmatprep.subr.bf16.mxu0 0
  %94 = vmatpush1.bf16.msra.mxu0 0
  %95 = vmatprep.subr.bf16.mxu0 0
  %96 = vmatpush1.bf16.msra.mxu0 0
  %97 = vmatprep.subr.bf16.mxu0 0
  %98 = vmatpush1.bf16.msra.mxu0 0
  %99 = vmatprep.subr.bf16.mxu0 0
  %100 = vmatpush1.bf16.msra.mxu0 0
  %101 = vmatprep.mubr.bf16.mxu0 0
  %102 = vmatmul.mubr.bf16.gmra.mrb[0].mxu0 %v63
  %v103 = vpop.f32.mrb[0].mxu0
  %v104 = vadd.f32 0.0, %v103
  %v105 = vpop.f32.mrb[0].mxu0
  %v106 = vpop.f32.mrb[0].mxu0
  %v107 = vadd.f32 0.0, %v106
  %v108 = vpop.f32.mrb[0].mxu0
  %109 = vdwg.mxu0
  %v110 = vld [vmem:[%s2] sm:$0xf]
  %v111 = vld [vmem:[%s3] sm:$0xf]
  %v113 = vrot.slane %v104, 4
  %v115 = vadd.f32 %v104, %v113
  %v116 = vadd.f32 %v115, %v107
  %v118 = vrot.slane %v107, 4
  %v120 = vadd.f32 %v116, %v118
  %vm121 = vcmask 125952
  %v122 = vsel %vm121, %v120, 0.0
  %123 = vadd.xlane.f32.xlu0 %v122
  %v124 = vpop.xlane.xlu0 %123
  %v125 = vmul.f32 %v124, 0.015625
  %v126 = vsub.f32 %v104, %v125
  %v127 = vmul.f32 %v126, %v126
  %v129 = vrot.slane %v125, 4
  %v131 = vsub.f32 %v104, %v129
  %v132 = vmul.f32 %v131, %v131
  %v134 = vrot.slane %v132, 4
  %v136 = vadd.f32 %v127, %v134
  %v137 = vsub.f32 %v107, %v125
  %v138 = vmul.f32 %v137, %v137
  %v139 = vadd.f32 %v136, %v138
  %v140 = vsub.f32 %v107, %v129
  %v141 = vmul.f32 %v140, %v140
  %v143 = vrot.slane %v141, 4
  %v145 = vadd.f32 %v139, %v143
  %v146 = vsel %vm121, %v145, 0.0
  %147 = vadd.xlane.f32.xlu0 %v146
  %v148 = vpop.xlane.xlu0 %147
  %v149 = vmul.f32 %v148, 0.015625
  %v150 = vadd.f32 %v149, 1e-05
  %v151 = vrsqrt.pop %v150
  %v152 = vmul.f32 %v110, %v151
  %154 = vset.pattern.permute.xlu0 0
  %155 = vperm.xlu0 %154, %v152
  %v156 = vpop.permute.xlu0 %155
  %v158 = vmul.f32 %v126, %v156
  %160 = vset.pattern.permute.xlu0 0
  %161 = vperm.xlu0 %160, %v111
  %v162 = vpop.permute.xlu0 %161
  %v164 = vadd.f32 %v158, %v162
  %v165 = vmax.f32 %v164, 0.0
  %v166 = vrot.slane %v156, 4
  %v168 = vmul.f32 %v131, %v166
  %v169 = vrot.slane %v162, 4
  %v171 = vadd.f32 %v168, %v169
  %v172 = vmax.f32 %v171, 0.0
  %v173 = vmul.f32 %v137, %v156
  %v174 = vadd.f32 %v173, %v162
  %v175 = vmax.f32 %v174, 0.0
  %v176 = vmul.f32 %v140, %v166
  %v177 = vadd.f32 %v176, %v169
  %v178 = vmax.f32 %v177, 0.0
  %180 = vrot.lane.b32.xlu0 %v120, 112
  %v181 = vpop.permute.xlu0 %180
  %v183 = vsel %vm121, %v181, 0.0
  %184 = vadd.xlane.f32.xlu0 %v183
  %v185 = vpop.xlane.xlu0 %184
  %v186 = vmul.f32 %v185, 0.015625
  %v187 = vsub.f32 %v104, %v186
  %v188 = vmul.f32 %v187, %v187
  %v190 = vrot.slane %v186, 4
  %v192 = vsub.f32 %v104, %v190
  %v193 = vmul.f32 %v192, %v192
  %v195 = vrot.slane %v193, 4
  %v197 = vadd.f32 %v188, %v195
  %v198 = vsub.f32 %v107, %v186
  %v199 = vmul.f32 %v198, %v198
  %v200 = vadd.f32 %v197, %v199
  %v201 = vsub.f32 %v107, %v190
  %v202 = vmul.f32 %v201, %v201
  %v204 = vrot.slane %v202, 4
  %v206 = vadd.f32 %v200, %v204
  %208 = vrot.lane.b32.xlu0 %v206, 112
  %v209 = vpop.permute.xlu0 %208
  %v211 = vsel %vm121, %v209, 0.0
  %212 = vadd.xlane.f32.xlu0 %v211
  %v213 = vpop.xlane.xlu0 %212
  %v214 = vmul.f32 %v213, 0.015625
  %v215 = vadd.f32 %v214, 1e-05
  %v216 = vrsqrt.pop %v215
  %v217 = vmul.f32 %v110, %v216
  %219 = vset.pattern.permute.xlu0 0
  %220 = vperm.xlu0 %219, %v217
  %v221 = vpop.permute.xlu0 %220
  %v223 = vmul.f32 %v187, %v221
  %v224 = vadd.f32 %v223, %v162
  %v225 = vmax.f32 %v224, 0.0
  %v226 = vrot.slane %v221, 4
  %v228 = vmul.f32 %v192, %v226
  %v229 = vadd.f32 %v228, %v169
  %v230 = vmax.f32 %v229, 0.0
  %v231 = vmul.f32 %v198, %v221
  %v232 = vadd.f32 %v231, %v162
  %v233 = vmax.f32 %v232, 0.0
  %v234 = vmul.f32 %v201, %v226
  %v235 = vadd.f32 %v234, %v169
  %v236 = vmax.f32 %v235, 0.0
  %vm237 = vcmask 130048
  %v238 = vsel %vm237, %v165, %v225
  %v239 = vsel %vm237, %v172, %v230
  %v240 = vsel %vm237, %v175, %v233
  %v241 = vsel %vm237, %v178, %v236
  %v242 = vsel %vm65, %v238, %v239
  %v243 = vsel %vm65, %v240, %v241
  %v244 = vpack.c.bf16 %v243, %v242
  %v246 = vunpack.c.l.b16 %v244
  %v247 = vunpack.c.h.b16 %v244
  %v248 = vpack.c.b16 %v246, %v246
  %v249 = vpack.c.b16 %v247, %v247
  %vm252 = vcmask 257024
  %253 = vst.msk [vmem:[%s4] sm:$0xf] %vm252, %v248
  %254 = vst.msk [vmem:[%s4 + $0x4] sm:$0xf] %vm252, %v249
  // Predicated region
  $region18: #{ae_forward.11} parent=0 // pred_check
    _
  $region19: #{ae_forward.11} parent=0 // pred_check_branch
    %256 = sbr.rel (0) target = $region21
  $region20: #{ae_forward.11} parent=0 // pred_region
    _
  $region21: #{ae_forward.11} parent=0 // pred_fallthru
    _
  // Predicated region
  $region22: #{ae_forward.11} parent=0 // pred_check
    _
  $region23: #{ae_forward.11} parent=0 // pred_check_branch
    %258 = sbr.rel (0) target = $region25
  $region24: #{ae_forward.11} parent=0 // pred_region
    _
  $region25: #{ae_forward.11} parent=0 // pred_fallthru
    _

// kernel: ae_forward.12
$region0: #{ae_forward.12}
  #allocation0 [shape = 'u32[]', space=smem, size = 0x4, offset = 0x4, fixed_abs, tag = 'smem constant byte address 0x4 - core index']
  #allocation1 [shape = 'u32[144,128]{1,0:T(1,128)}', space=vmem, size = 0x12000, scoped, tag = 'internal scratch']
  %s0 = inlined_call_operand.vmem [shape: bf16[36,128], index: 0, kind: input, shape index: {}]
  %s1 = inlined_call_operand.vmem [shape: bf16[8,36], index: 1, kind: input, shape index: {}]
  %s2 = inlined_call_operand.vmem [shape: f32[2,1], index: 2, kind: input, shape index: {}]
  %s3 = inlined_call_operand.vmem [shape: f32[2,1], index: 3, kind: input, shape index: {}]
  %s4 = inlined_call_operand.vmem [shape: bf16[8,128], index: 4, kind: output, shape index: {}]
  %s5 = sld [smem:[#allocation0]]
  $region26: #{ae_forward.12} parent=0
    _
  %s7 = ssub.s32 1, %s5
  %s8 = scalar_select 0, %s7, %s5
  // Predicated region
  $region2: #{ae_forward.12} parent=0 // pred_check
    _
  $region3: #{ae_forward.12} parent=0 // pred_check_branch
    %10 = sbr.rel (0) target = $region5
  $region4: #{ae_forward.12} parent=0 // pred_region
    _
  $region5: #{ae_forward.12} parent=0 // pred_fallthru
    _
  // Predicated region
  $region6: #{ae_forward.12} parent=0 // pred_check
    _
  $region7: #{ae_forward.12} parent=0 // pred_check_branch
    %12 = sbr.rel (0) target = $region9
  $region8: #{ae_forward.12} parent=0 // pred_region
    _
  $region9: #{ae_forward.12} parent=0 // pred_fallthru
    _
  // Predicated region
  $region10: #{ae_forward.12} parent=0 // pred_check
    _
  $region11: #{ae_forward.12} parent=0 // pred_check_branch
    %14 = sbr.rel (0) target = $region13
  $region12: #{ae_forward.12} parent=0 // pred_region
    _
  $region13: #{ae_forward.12} parent=0 // pred_fallthru
    _
  // Predicated region
  $region14: #{ae_forward.12} parent=0 // pred_check
    _
  $region15: #{ae_forward.12} parent=0 // pred_check_branch
    %16 = sbr.rel (0) target = $region17
  $region16: #{ae_forward.12} parent=0 // pred_region
    _
  $region17: #{ae_forward.12} parent=0 // pred_fallthru
    _
  %v18 = vld [vmem:[%s1] sm:$0xf]
  %v19 = vld [vmem:[%s0] sm:$0xf]
  %v20 = vld [vmem:[%s0 + $0x4] sm:$0xf]
  %v21 = vld [vmem:[%s0 + $0x8] sm:$0xf]
  %v22 = vld [vmem:[%s0 + $0xc] sm:$0xf]
  %v23 = vld [vmem:[%s0 + $0x10] sm:$0x3]
  %v29 = vunpack.c.l.b16 %v19
  %v30 = vunpack.c.l.b16 %v20
  %v31 = vunpack.c.l.b16 %v21
  %v32 = vunpack.c.l.b16 %v22
  %v33 = vunpack.c.l.b16 %v23
  %v34 = vpack.c.b16 %v30, %v29
  %v35 = vpack.c.b16 %v32, %v31
  %v36 = vpack.c.b16 %v33, %v33
  %vm39 = vcmask 293888
  %v41 = vsel %vm39, %v18, 0
  %vm43 = vcmask 1041408
  %v45 = vsel %vm43, %v36, 0
  %47 = vmatprep.subr.bf16.mxu0 0
  %48 = vmatpush1.bf16.msra.mxu0 %v34
  %49 = vmatprep.subr.bf16.mxu0 0
  %50 = vmatpush1.bf16.msra.mxu0 %v35
  %51 = vmatprep.subr.bf16.mxu0 0
  %52 = vmatpush1.bf16.msra.mxu0 %v45
  %53 = vmatprep.subr.bf16.mxu0 0
  %54 = vmatpush1.bf16.msra.mxu0 0
  %55 = vmatprep.subr.bf16.mxu0 0
  %56 = vmatpush1.bf16.msra.mxu0 0
  %57 = vmatprep.subr.bf16.mxu0 0
  %58 = vmatpush1.bf16.msra.mxu0 0
  %59 = vmatprep.subr.bf16.mxu0 0
  %60 = vmatpush1.bf16.msra.mxu0 0
  %61 = vmatprep.subr.bf16.mxu0 0
  %62 = vmatpush1.bf16.msra.mxu0 0
  %63 = vmatprep.subr.bf16.mxu0 0
  %64 = vmatpush1.bf16.msra.mxu0 0
  %65 = vmatprep.subr.bf16.mxu0 0
  %66 = vmatpush1.bf16.msra.mxu0 0
  %67 = vmatprep.subr.bf16.mxu0 0
  %68 = vmatpush1.bf16.msra.mxu0 0
  %69 = vmatprep.subr.bf16.mxu0 0
  %70 = vmatpush1.bf16.msra.mxu0 0
  %71 = vmatprep.subr.bf16.mxu0 0
  %72 = vmatpush1.bf16.msra.mxu0 0
  %73 = vmatprep.subr.bf16.mxu0 0
  %74 = vmatpush1.bf16.msra.mxu0 0
  %75 = vmatprep.subr.bf16.mxu0 0
  %76 = vmatpush1.bf16.msra.mxu0 0
  %77 = vmatprep.subr.bf16.mxu0 0
  %78 = vmatpush1.bf16.msra.mxu0 0
  %79 = vmatprep.mubr.bf16.mxu0 0
  %80 = vmatmul.mubr.bf16.gmra.mrb[0].mxu0 %v41
  %v81 = vpop.f32.mrb[0].mxu0
  %v82 = vadd.f32 0.0, %v81
  %v83 = vpop.f32.mrb[0].mxu0
  %v84 = vpop.f32.mrb[0].mxu0
  %v85 = vpop.f32.mrb[0].mxu0
  %86 = vdwg.mxu0
  %v87 = vld [vmem:[%s2] sm:$0x3]
  %v88 = vld [vmem:[%s3] sm:$0x3]
  %v90 = vrot.slane %v82, 2
  %v92 = vadd.f32 %v82, %v90
  %v93 = vrot.slane %v82, 4
  %v95 = vadd.f32 %v92, %v93
  %v96 = vrot.slane %v82, 6
  %v98 = vadd.f32 %v95, %v96
  %vm99 = vcmask 517120
  %v100 = vsel %vm99, %v98, 0.0
  %101 = vadd.xlane.f32.xlu0 %v100
  %v102 = vpop.xlane.xlu0 %101
  %v103 = vmul.f32 %v102, 0.00390625
  %v104 = vsub.f32 %v82, %v103
  %v105 = vmul.f32 %v104, %v104
  %v107 = vrot.slane %v103, 6
  %v109 = vsub.f32 %v82, %v107
  %v110 = vmul.f32 %v109, %v109
  %v112 = vrot.slane %v110, 2
  %v114 = vadd.f32 %v105, %v112
  %v115 = vrot.slane %v103, 4
  %v117 = vsub.f32 %v82, %v115
  %v118 = vmul.f32 %v117, %v117
  %v120 = vrot.slane %v118, 4
  %v122 = vadd.f32 %v114, %v120
  %v123 = vrot.slane %v103, 2
  %v125 = vsub.f32 %v82, %v123
  %v126 = vmul.f32 %v125, %v125
  %v128 = vrot.slane %v126, 6
  %v130 = vadd.f32 %v122, %v128
  %v131 = vsel %vm99, %v130, 0.0
  %132 = vadd.xlane.f32.xlu0 %v131
  %v133 = vpop.xlane.xlu0 %132
  %v134 = vmul.f32 %v133, 0.00390625
  %v135 = vadd.f32 %v134, 1e-05
  %v136 = vrsqrt.pop %v135
  %v137 = vmul.f32 %v87, %v136
  %139 = vset.pattern.permute.xlu0 0
  %140 = vperm.xlu0 %139, %v137
  %v141 = vpop.permute.xlu0 %140
  %v143 = vmul.f32 %v104, %v141
  %145 = vset.pattern.permute.xlu0 0
  %146 = vperm.xlu0 %145, %v88
  %v147 = vpop.permute.xlu0 %146
  %v149 = vadd.f32 %v143, %v147
  %v150 = vmax.f32 %v149, 0.0
  %v151 = vrot.slane %v141, 6
  %v153 = vmul.f32 %v109, %v151
  %v154 = vrot.slane %v147, 6
  %v156 = vadd.f32 %v153, %v154
  %v157 = vmax.f32 %v156, 0.0
  %v158 = vrot.slane %v141, 4
  %v160 = vmul.f32 %v117, %v158
  %v161 = vrot.slane %v147, 4
  %v163 = vadd.f32 %v160, %v161
  %v164 = vmax.f32 %v163, 0.0
  %v165 = vrot.slane %v141, 2
  %v167 = vmul.f32 %v125, %v165
  %v168 = vrot.slane %v147, 2
  %v170 = vadd.f32 %v167, %v168
  %v171 = vmax.f32 %v170, 0.0
  %173 = vrot.lane.b32.xlu0 %v98, 64
  %v174 = vpop.permute.xlu0 %173
  %v176 = vsel %vm99, %v174, 0.0
  %177 = vadd.xlane.f32.xlu0 %v176
  %v178 = vpop.xlane.xlu0 %177
  %v179 = vmul.f32 %v178, 0.00390625
  %v180 = vsub.f32 %v82, %v179
  %v181 = vmul.f32 %v180, %v180
  %v183 = vrot.slane %v179, 6
  %v185 = vsub.f32 %v82, %v183
  %v186 = vmul.f32 %v185, %v185
  %v188 = vrot.slane %v186, 2
  %v190 = vadd.f32 %v181, %v188
  %v191 = vrot.slane %v179, 4
  %v193 = vsub.f32 %v82, %v191
  %v194 = vmul.f32 %v193, %v193
  %v196 = vrot.slane %v194, 4
  %v198 = vadd.f32 %v190, %v196
  %v199 = vrot.slane %v179, 2
  %v201 = vsub.f32 %v82, %v199
  %v202 = vmul.f32 %v201, %v201
  %v204 = vrot.slane %v202, 6
  %v206 = vadd.f32 %v198, %v204
  %208 = vrot.lane.b32.xlu0 %v206, 64
  %v209 = vpop.permute.xlu0 %208
  %v211 = vsel %vm99, %v209, 0.0
  %212 = vadd.xlane.f32.xlu0 %v211
  %v213 = vpop.xlane.xlu0 %212
  %v214 = vmul.f32 %v213, 0.00390625
  %v215 = vadd.f32 %v214, 1e-05
  %v216 = vrsqrt.pop %v215
  %v217 = vmul.f32 %v87, %v216
  %219 = vset.pattern.permute.xlu0 0
  %220 = vperm.xlu0 %219, %v217
  %v221 = vpop.permute.xlu0 %220
  %v223 = vmul.f32 %v180, %v221
  %v224 = vadd.f32 %v223, %v147
  %v225 = vmax.f32 %v224, 0.0
  %v226 = vrot.slane %v221, 6
  %v228 = vmul.f32 %v185, %v226
  %v229 = vadd.f32 %v228, %v154
  %v230 = vmax.f32 %v229, 0.0
  %v231 = vrot.slane %v221, 4
  %v233 = vmul.f32 %v193, %v231
  %v234 = vadd.f32 %v233, %v161
  %v235 = vmax.f32 %v234, 0.0
  %v236 = vrot.slane %v221, 2
  %v238 = vmul.f32 %v201, %v236
  %v239 = vadd.f32 %v238, %v168
  %v240 = vmax.f32 %v239, 0.0
  %vm241 = vcmask 523264
  %v242 = vsel %vm241, %v150, %v225
  %v243 = vsel %vm241, %v157, %v230
  %v244 = vsel %vm241, %v164, %v235
  %v245 = vsel %vm241, %v171, %v240
  %v246 = vsel %vm43, %v242, %v243
  %vm247 = vcmask 1043456
  %v248 = vsel %vm247, %v246, %v244
  %vm249 = vcmask 1045504
  %v250 = vsel %vm249, %v248, %v245
  %v251 = vpack.c.bf16 %v250, %v250
  %252 = vst [vmem:[%s4] sm:$0xf] %v251
  // Predicated region
  $region18: #{ae_forward.12} parent=0 // pred_check
    _
  $region19: #{ae_forward.12} parent=0 // pred_check_branch
    %254 = sbr.rel (0) target = $region21
  $region20: #{ae_forward.12} parent=0 // pred_region
    _
  $region21: #{ae_forward.12} parent=0 // pred_fallthru
    _
  // Predicated region
  $region22: #{ae_forward.12} parent=0 // pred_check
    _
  $region23: #{ae_forward.12} parent=0 // pred_check_branch
    %256 = sbr.rel (0) target = $region25
  $region24: #{ae_forward.12} parent=0 // pred_region
    _
  $region25: #{ae_forward.12} parent=0 // pred_fallthru
    _

// kernel: ae_forward.13
$region0: #{ae_forward.13}
  #allocation0 [shape = 'u32[]', space=smem, size = 0x4, offset = 0x4, fixed_abs, tag = 'smem constant byte address 0x4 - core index']
  #allocation1 [shape = 'u32[144,128]{1,0:T(1,128)}', space=vmem, size = 0x12000, scoped, tag = 'internal scratch']
  %s0 = inlined_call_operand.vmem [shape: bf16[18,512], index: 0, kind: input, shape index: {}]
  %s1 = inlined_call_operand.vmem [shape: bf16[12,18], index: 1, kind: input, shape index: {}]
  %s2 = inlined_call_operand.vmem [shape: f32[12,1], index: 2, kind: input, shape index: {}]
  %s3 = inlined_call_operand.vmem [shape: f32[12,512], index: 3, kind: output, shape index: {}]
  %s4 = sld [smem:[#allocation0]]
  $region22: #{ae_forward.13} parent=0
    _
  %s6 = ssub.s32 1, %s4
  %s7 = scalar_select 0, %s6, %s4
  // Predicated region
  $region2: #{ae_forward.13} parent=0 // pred_check
    _
  $region3: #{ae_forward.13} parent=0 // pred_check_branch
    %9 = sbr.rel (0) target = $region5
  $region4: #{ae_forward.13} parent=0 // pred_region
    _
  $region5: #{ae_forward.13} parent=0 // pred_fallthru
    _
  // Predicated region
  $region6: #{ae_forward.13} parent=0 // pred_check
    _
  $region7: #{ae_forward.13} parent=0 // pred_check_branch
    %11 = sbr.rel (0) target = $region9
  $region8: #{ae_forward.13} parent=0 // pred_region
    _
  $region9: #{ae_forward.13} parent=0 // pred_fallthru
    _
  // Predicated region
  $region10: #{ae_forward.13} parent=0 // pred_check
    _
  $region11: #{ae_forward.13} parent=0 // pred_check_branch
    %13 = sbr.rel (0) target = $region13
  $region12: #{ae_forward.13} parent=0 // pred_region
    _
  $region13: #{ae_forward.13} parent=0 // pred_fallthru
    _
  %v15 = vld [vmem:[%s1] sm:$0xf]
  %v16 = vld [vmem:[%s1 + $0x4] sm:$0x3]
  %v17 = vld [vmem:[%s0] sm:$0xff]
  %v18 = vld [vmem:[%s0 + $0x8] sm:$0xff]
  %v19 = vld [vmem:[%s0 + $0x10] sm:$0xff]
  %v20 = vld [vmem:[%s0 + $0x18] sm:$0xff]
  %v21 = vld [vmem:[%s0 + $0x20] sm:$0x11]
  %v22 = vld [vmem:[%s0 + $0x28] sm:$0x11]
  %v23 = vld [vmem:[%s2] sm:$0xff]
  %v24 = vld [vmem:[%s2 + $0x8] sm:$0xf]
  %26 = vset.pattern.permute.xlu0 0
  %27 = vperm.xlu0 %26, %v23
  %v28 = vpop.permute.xlu0 %27
  %31 = vset.pattern.permute.xlu0 0
  %32 = vperm.xlu0 %31, %v24
  %v33 = vpop.permute.xlu0 %32
  %v37 = vunpack.c.l.b16 %v15
  %v38 = vunpack.c.l.b16 %v16
  %v39 = vpack.c.b16 %v38, %v37
  %v46 = vunpack.c.l.b16 %v17
  %v47 = vunpack.c.h.b16 %v17
  %v48 = vunpack.c.l.b16 %v18
  %v49 = vunpack.c.h.b16 %v18
  %v50 = vunpack.c.l.b16 %v19
  %v51 = vunpack.c.h.b16 %v19
  %v52 = vunpack.c.l.b16 %v20
  %v53 = vunpack.c.h.b16 %v20
  %v54 = vunpack.c.l.b16 %v21
  %v55 = vunpack.c.h.b16 %v21
  %v56 = vunpack.c.l.b16 %v22
  %v57 = vunpack.c.h.b16 %v22
  %v58 = vpack.c.b16 %v50, %v46
  %v59 = vpack.c.b16 %v51, %v47
  %v60 = vpack.c.b16 %v52, %v48
  %v61 = vpack.c.b16 %v53, %v49
  %v62 = vpack.c.b16 %v54, %v54
  %v63 = vpack.c.b16 %v55, %v55
  %v64 = vpack.c.b16 %v56, %v56
  %v65 = vpack.c.b16 %v57, %v57
  %vm70 = vcmask 146432
  %v72 = vsel %vm70, %v39, 0
  %vm74 = vcmask 1040384
  %v76 = vsel %vm74, %v62, 0
  %v79 = vsel %vm74, %v63, 0
  %v82 = vsel %vm74, %v64, 0
  %v85 = vsel %vm74, %v65, 0
  %87 = vmatprep.subr.bf16.mxu0 %v59
  %88 = vmatpush1.bf16.msra.mxu0 %v58
  %89 = vmatprep.subr.bf16.mxu0 %v79
  %90 = vmatpush1.bf16.msra.mxu0 %v76
  %91 = vmatprep.subr.bf16.mxu0 0
  %92 = vmatpush1.bf16.msra.mxu0 0
  %93 = vmatprep.subr.bf16.mxu0 0
  %94 = vmatpush1.bf16.msra.mxu0 0
  %95 = vmatprep.subr.bf16.mxu0 0
  %96 = vmatpush1.bf16.msra.mxu0 0
  %97 = vmatprep.subr.bf16.mxu0 0
  %98 = vmatpush1.bf16.msra.mxu0 0
  %99 = vmatprep.subr.bf16.mxu0 0
  %100 = vmatpush1.bf16.msra.mxu0 0
  %101 = vmatprep.subr.bf16.mxu0 0
  %102 = vmatpush1.bf16.msra.mxu0 0
  %103 = vmatprep.subr.bf16.mxu0 0
  %104 = vmatpush1.bf16.msra.mxu0 0
  %105 = vmatprep.subr.bf16.mxu0 0
  %106 = vmatpush1.bf16.msra.mxu0 0
  %107 = vmatprep.subr.bf16.mxu0 0
  %108 = vmatpush1.bf16.msra.mxu0 0
  %109 = vmatprep.subr.bf16.mxu0 0
  %110 = vmatpush1.bf16.msra.mxu0 0
  %111 = vmatprep.subr.bf16.mxu0 0
  %112 = vmatpush1.bf16.msra.mxu0 0
  %113 = vmatprep.subr.bf16.mxu0 0
  %114 = vmatpush1.bf16.msra.mxu0 0
  %115 = vmatprep.subr.bf16.mxu0 0
  %116 = vmatpush1.bf16.msra.mxu0 0
  %117 = vmatprep.subr.bf16.mxu0 0
  %118 = vmatpush1.bf16.msra.mxu0 0
  %119 = vmatprep.mubr.bf16.mxu0 0
  %120 = vmatmul.mubr.bf16.gmra.mrb[0].mxu0 %v72
  %v121 = vpop.f32.mrb[0].mxu0
  %v122 = vadd.f32 %v28, %v121
  %v123 = vpop.f32.mrb[0].mxu0
  %v124 = vadd.f32 %v28, %v123
  %v125 = vpop.f32.mrb[0].mxu0
  %v126 = vadd.f32 %v33, %v125
  %v127 = vpop.f32.mrb[0].mxu0
  %v128 = vadd.f32 %v33, %v127
  %129 = vdwg.mxu0
  %130 = vmatprep.subr.bf16.mxu0 %v61
  %131 = vmatpush1.bf16.msra.mxu0 %v60
  %132 = vmatprep.subr.bf16.mxu0 %v85
  %133 = vmatpush1.bf16.msra.mxu0 %v82
  %134 = vmatprep.subr.bf16.mxu0 0
  %135 = vmatpush1.bf16.msra.mxu0 0
  %136 = vmatprep.subr.bf16.mxu0 0
  %137 = vmatpush1.bf16.msra.mxu0 0
  %138 = vmatprep.subr.bf16.mxu0 0
  %139 = vmatpush1.bf16.msra.mxu0 0
  %140 = vmatprep.subr.bf16.mxu0 0
  %141 = vmatpush1.bf16.msra.mxu0 0
  %142 = vmatprep.subr.bf16.mxu0 0
  %143 = vmatpush1.bf16.msra.mxu0 0
  %144 = vmatprep.subr.bf16.mxu0 0
  %145 = vmatpush1.bf16.msra.mxu0 0
  %146 = vmatprep.subr.bf16.mxu0 0
  %147 = vmatpush1.bf16.msra.mxu0 0
  %148 = vmatprep.subr.bf16.mxu0 0
  %149 = vmatpush1.bf16.msra.mxu0 0
  %150 = vmatprep.subr.bf16.mxu0 0
  %151 = vmatpush1.bf16.msra.mxu0 0
  %152 = vmatprep.subr.bf16.mxu0 0
  %153 = vmatpush1.bf16.msra.mxu0 0
  %154 = vmatprep.subr.bf16.mxu0 0
  %155 = vmatpush1.bf16.msra.mxu0 0
  %156 = vmatprep.subr.bf16.mxu0 0
  %157 = vmatpush1.bf16.msra.mxu0 0
  %158 = vmatprep.subr.bf16.mxu0 0
  %159 = vmatpush1.bf16.msra.mxu0 0
  %160 = vmatprep.subr.bf16.mxu0 0
  %161 = vmatpush1.bf16.msra.mxu0 0
  %162 = vmatprep.mubr.bf16.mxu0 0
  %163 = vmatmul.mubr.bf16.gmra.mrb[0].mxu0 %v72
  %v164 = vpop.f32.mrb[0].mxu0
  %v165 = vadd.f32 %v28, %v164
  %v166 = vpop.f32.mrb[0].mxu0
  %v167 = vadd.f32 %v28, %v166
  %v168 = vpop.f32.mrb[0].mxu0
  %v169 = vadd.f32 %v33, %v168
  %v170 = vpop.f32.mrb[0].mxu0
  %v171 = vadd.f32 %v33, %v170
  %172 = vdwg.mxu0
  %v173 = vtanh.pop %v122
  %v174 = vtanh.pop %v124
  %v175 = vtanh.pop %v165
  %v176 = vtanh.pop %v167
  %v177 = vtanh.pop %v126
  %v178 = vtanh.pop %v128
  %v179 = vtanh.pop %v169
  %v180 = vtanh.pop %v171
  %181 = vst [vmem:[%s3] sm:$0xff] %v173
  %182 = vst [vmem:[%s3 + $0x8] sm:$0xff] %v174
  %183 = vst [vmem:[%s3 + $0x10] sm:$0xff] %v175
  %184 = vst [vmem:[%s3 + $0x18] sm:$0xff] %v176
  %185 = vst [vmem:[%s3 + $0x20] sm:$0xf] %v177
  %186 = vst [vmem:[%s3 + $0x28] sm:$0xf] %v178
  %187 = vst [vmem:[%s3 + $0x30] sm:$0xf] %v179
  %188 = vst [vmem:[%s3 + $0x38] sm:$0xf] %v180
  // Predicated region
  $region14: #{ae_forward.13} parent=0 // pred_check
    _
  $region15: #{ae_forward.13} parent=0 // pred_check_branch
    %190 = sbr.rel (0) target = $region17
  $region16: #{ae_forward.13} parent=0 // pred_region
    _
  $region17: #{ae_forward.13} parent=0 // pred_fallthru
    _
  // Predicated region
  $region18: #{ae_forward.13} parent=0 // pred_check
    _
  $region19: #{ae_forward.13} parent=0 // pred_check_branch
    %192 = sbr.rel (0) target = $region21
  $region20: #{ae_forward.13} parent=0 // pred_region
    _
  $region21: #{ae_forward.13} parent=0 // pred_fallthru
    _

</llo_original>
